<compile_context>
chip_gen: v7x
topology: tpu7x:2x2x1
jax: 0.10.0
libtpu: 0.0.40
codegen_flags: <defaults>
</compile_context>

<pallas_src>
import functools

import jax
import jax.numpy as jnp
from jax import lax
from jax.experimental import pallas as pl
from jax.experimental.pallas import tpu as pltpu

EPS = 1e-5
KSIZE = 3  # kernel_size=3, padding=1, stride=1, dilation=1 -> same-length output


def _round_up(n, m):
    return ((n + m - 1) // m) * m


@functools.partial(jax.jit, static_argnames=("compute_dtype",))
def residual_block(x, w1, g1, b1, w2, g2, b2, *, compute_dtype=jnp.bfloat16):
    """x: (B, C, L) f32; w*: (C, C, 3); g*/b*: (C,).  Returns (B, C, L) f32."""
    B, Cin, L = x.shape
    Cout = w1.shape[0]
    assert Cin == Cout, "residual add requires in_channels == out_channels (no downsample)"

    sublane = 16 if compute_dtype == jnp.bfloat16 else 8
    C_p = _round_up(Cout, sublane)
    L_pad = _round_up(L + 1, 128)          # >= L+1 zero columns double as the conv halo
    inv_count = 1.0 / float(B * L)         # BN stats over (batch, valid length)

    # ---- layout: zero-pad only, no transposes ---------------------------------
    xp = jnp.pad(x, ((0, 0), (0, C_p - Cin), (0, L_pad - L)))          # (B, C_p, L_pad)

    def prep_w(w):
        wp = jnp.pad(w, ((0, C_p - w.shape[0]), (0, C_p - w.shape[1]), (0, 0)))
        return jnp.transpose(wp, (2, 0, 1))                            # (3, C_p, C_p)

    def prep_p(p):
        return jnp.pad(p, (0, C_p - p.shape[0]))                       # (C_p,)

    w1t, w2t = prep_w(w1), prep_w(w2)
    g1p, b1p, g2p, b2p = prep_p(g1), prep_p(b1), prep_p(g2), prep_p(b2)

    # ---- shared in-kernel helpers ----------------------------------------------
    def _mask():
        # valid-length mask, computed once per grid step (no DMA, no re-broadcast)
        return (lax.broadcasted_iota(jnp.int32, (1, L_pad), 1) < L).astype(jnp.float32)

    def _conv3(h, w_ref):
        # 3-tap conv as 3 accumulated MXU pushes, compute_dtype operands, f32 acc.
        # Circular roll is safe: column L_pad-1 of `h` is always zero (input pad /
        # explicit masking before the call), so taps never leak across batches.
        hl = pltpu.roll(h, 1, axis=1).astype(compute_dtype)            # h[p-1]
        hc = h.astype(compute_dtype)
        hr = pltpu.roll(h, L_pad - 1, axis=1).astype(compute_dtype)    # h[p+1]
        acc = jnp.dot(w_ref[0].astype(compute_dtype), hl, preferred_element_type=jnp.float32)
        acc = acc + jnp.dot(w_ref[1].astype(compute_dtype), hc, preferred_element_type=jnp.float32)
        acc = acc + jnp.dot(w_ref[2].astype(compute_dtype), hr, preferred_element_type=jnp.float32)
        return acc

    def _stats(acc, mask, s_ref, ss_ref):
        am = acc * mask                                                 # reused for both stats
        s_ref[0] = jnp.sum(am, axis=1, keepdims=True)
        ss_ref[0] = jnp.sum(am * acc, axis=1, keepdims=True)

    # ---- pass 1: conv1 + partial BN1 stats --------------------------------------
    def conv1_kernel(x_ref, w_ref, h_ref, s_ref, ss_ref):
        x0 = x_ref[0].astype(jnp.float32)                               # zero tail columns
        acc = _conv3(x0, w_ref)
        _stats(acc, _mask(), s_ref, ss_ref)
        h_ref[0] = acc.astype(h_ref.dtype)

    # ---- pass 2: BN1 apply + ReLU + conv2 + partial BN2 stats --------------------
    def conv2_kernel(h_ref, sc_ref, sh_ref, w_ref, h2_ref, s_ref, ss_ref):
        mask = _mask()
        h = h_ref[0].astype(jnp.float32)
        a = jnp.maximum(h * sc_ref[...] + sh_ref[...], 0.0) * mask      # zero tail -> halo
        acc = _conv3(a, w_ref)
        _stats(acc, mask, s_ref, ss_ref)
        h2_ref[0] = acc.astype(h2_ref.dtype)

    # ---- pass 3: BN2 apply + residual + ReLU -------------------------------------
    def out_kernel(h2_ref, x_ref, sc_ref, sh_ref, o_ref):
        y = h2_ref[0].astype(jnp.float32) * sc_ref[...] + sh_ref[...]
        y = y + x_ref[0].astype(jnp.float32)
        o_ref[0] = jnp.maximum(y, 0.0).astype(o_ref.dtype)

    # ---- specs / compiler params --------------------------------------------------
    slab_spec = pl.BlockSpec((1, C_p, L_pad), lambda b: (b, 0, 0))
    w_spec = pl.BlockSpec((KSIZE, C_p, C_p), lambda b: (0, 0, 0))
    vec_spec = pl.BlockSpec((C_p, 1), lambda b: (0, 0))
    stat_spec = pl.BlockSpec((1, C_p, 1), lambda b: (b, 0, 0))

    slab_bytes = C_p * L_pad * 4
    vmem_limit = int(min(64 * 1024 * 1024, max(8 * 1024 * 1024, 16 * slab_bytes)))
    cparams = pltpu.CompilerParams(dimension_semantics=("parallel",),
                                   vmem_limit_bytes=vmem_limit)

    stat_shape = jax.ShapeDtypeStruct((B, C_p, 1), jnp.float32)
    h_shape = jax.ShapeDtypeStruct((B, C_p, L_pad), compute_dtype)

    def bn_coeffs(s, ss, gamma, beta):
        s = jnp.sum(s, axis=0)[:, 0]                                    # (C_p,)
        ss = jnp.sum(ss, axis=0)[:, 0]
        mean = s * inv_count
        var = ss * inv_count - mean * mean                              # biased variance
        inv = lax.rsqrt(var + EPS)
        scale = gamma * inv
        shift = beta - mean * scale
        return scale.reshape(C_p, 1), shift.reshape(C_p, 1)

    h1, s1, ss1 = pl.pallas_call(
        conv1_kernel,
        grid=(B,),
        in_specs=[slab_spec, w_spec],
        out_specs=(slab_spec, stat_spec, stat_spec),
        out_shape=(h_shape, stat_shape, stat_shape),
        compiler_params=cparams,
    )(xp, w1t)
    scale1, shift1 = bn_coeffs(s1, ss1, g1p, b1p)

    h2, s2, ss2 = pl.pallas_call(
        conv2_kernel,
        grid=(B,),
        in_specs=[slab_spec, vec_spec, vec_spec, w_spec],
        out_specs=(slab_spec, stat_spec, stat_spec),
        out_shape=(h_shape, stat_shape, stat_shape),
        compiler_params=cparams,
    )(h1, scale1, shift1, w2t)
    scale2, shift2 = bn_coeffs(s2, ss2, g2p, b2p)

    out_p = pl.pallas_call(
        out_kernel,
        grid=(B,),
        in_specs=[slab_spec, slab_spec, vec_spec, vec_spec],
        out_specs=pl.BlockSpec((1, C_p, L_pad), lambda b: (b, 0, 0)),
        out_shape=jax.ShapeDtypeStruct((B, C_p, L_pad), x.dtype),
        compiler_params=cparams,
    )(h2, xp, scale2, shift2)

    return out_p[:, :Cout, :L]


def _reference_forward(x, w1, g1, b1, w2, g2, b2):
    """Pure-JAX reference matching the PyTorch forward (training-mode BN)."""
    def conv1d(inp, w):
        return lax.conv_general_dilated(
            inp, w, window_strides=(1,), padding=((1, 1),),
            dimension_numbers=("NCH", "OIH", "NCH"))

    def bn(y, g, b):
        mean = y.mean(axis=(0, 2), keepdims=True)
        var = ((y - mean) ** 2).mean(axis=(0, 2), keepdims=True)
        return (y - mean) / jnp.sqrt(var + EPS) * g.reshape(1, -1, 1) + b.reshape(1, -1, 1)

    out = jnp.maximum(bn(conv1d(x, w1), g1, b1), 0.0)
    out = bn(conv1d(out, w2), g2, b2)
    return jnp.maximum(out + x, 0.0)


if __name__ == "__main__":
    B, C, L = 2, 4, 16  # in_channels == out_channels, stride=1, no downsample

    key = jax.random.PRNGKey(0)
    kx, kw1, kw2, kg1, kb1, kg2, kb2 = jax.random.split(key, 7)

    x = jax.random.normal(kx, (B, C, L), jnp.float32)
    w1 = jax.random.normal(kw1, (C, C, KSIZE), jnp.float32) * 0.3
    w2 = jax.random.normal(kw2, (C, C, KSIZE), jnp.float32) * 0.3
    g1 = 1.0 + 0.1 * jax.random.normal(kg1, (C,), jnp.float32)
    b1 = 0.05 * jax.random.normal(kb1, (C,), jnp.float32)
    g2 = 1.0 + 0.1 * jax.random.normal(kg2, (C,), jnp.float32)
    b2 = 0.05 * jax.random.normal(kb2, (C,), jnp.float32)

    ref = jax.block_until_ready(_reference_forward(x, w1, g1, b1, w2, g2, b2))

    # exact-semantics check: f32 MXU operands
    out_f32 = jax.block_until_ready(
        residual_block(x, w1, g1, b1, w2, g2, b2, compute_dtype=jnp.float32))
    assert out_f32.shape == (B, C, L) and out_f32.dtype == jnp.float32
    assert jnp.allclose(out_f32, ref, atol=1e-4, rtol=1e-4), "f32 path mismatch vs reference"

    # performance path (default): bf16 MXU operands / bf16 intermediates, f32 BN math
    out_bf16 = jax.block_until_ready(residual_block(x, w1, g1, b1, w2, g2, b2))
    assert out_bf16.shape == (B, C, L) and out_bf16.dtype == jnp.float32
    assert jnp.allclose(out_bf16, ref, atol=5e-2, rtol=5e-2), "bf16 path mismatch vs reference"

    print("KERNEL_OK")
</pallas_src>

<mosaic_0001>
module attributes {stable_mosaic.version = 11 : i64} {
  func.func @conv1_kernel(%arg0: i32, %arg1: memref<1x8x128xf32, #tpu.memory_space<vmem>>, %arg2: memref<3x8x8xf32, #tpu.memory_space<vmem>>, %arg3: memref<1x8x128xf32, #tpu.memory_space<vmem>>, %arg4: memref<1x8x1xf32, #tpu.memory_space<vmem>>, %arg5: memref<1x8x1xf32, #tpu.memory_space<vmem>>) attributes {dimension_semantics = [#tpu.dimension_semantics<parallel>], iteration_bounds = array<i64: 2>, scalar_prefetch = 0 : i64, scratch_operands = 0 : i64, tpu.core_type = #tpu.core_type<tc>, window_params = [{transform_indices = @transform_0, window_bounds = array<i64: 1, 8, 128>}, {pipeline_mode = #tpu.pipeline_mode<synchronous>, transform_indices = @transform_1, window_bounds = array<i64: 3, 8, 8>}, {transform_indices = @transform_2, window_bounds = array<i64: 1, 8, 128>}, {transform_indices = @transform_3, window_bounds = array<i64: 1, 8, 1>}, {transform_indices = @transform_4, window_bounds = array<i64: 1, 8, 1>}]} {
    %c0 = arith.constant 0 : index
    %c0_0 = arith.constant 0 : index
    %c0_1 = arith.constant 0 : index
    %0 = vector.load %arg1[%c0, %c0_0, %c0_1] : memref<1x8x128xf32, #tpu.memory_space<vmem>>, vector<1x8x128xf32>
    %1 = vector.shape_cast %0 : vector<1x8x128xf32> to vector<8x128xf32>
    %c1_i32 = arith.constant 1 : i32
    %2 = tpu.dynamic_rotate %1 by %c1_i32 dim 1 : vector<8x128xf32>, i32 -> vector<8x128xf32>
    %c127_i32 = arith.constant 127 : i32
    %3 = tpu.dynamic_rotate %1 by %c127_i32 dim 1 : vector<8x128xf32>, i32 -> vector<8x128xf32>
    %c0_2 = arith.constant 0 : index
    %c0_3 = arith.constant 0 : index
    %c0_4 = arith.constant 0 : index
    %4 = vector.load %arg2[%c0_2, %c0_3, %c0_4] : memref<3x8x8xf32, #tpu.memory_space<vmem>>, vector<1x8x8xf32>
    %5 = vector.shape_cast %4 : vector<1x8x8xf32> to vector<8x8xf32>
    %cst = arith.constant dense<0.000000e+00> : vector<8x128xf32>
    %6 = tpu.matmul %5, %2, %cst {dimension_numbers = #tpu.dot_dimension_numbers<[1], [0], [0], [1], [0, 0, 1, 1], [], []>} : vector<8x8xf32>, vector<8x128xf32>, vector<8x128xf32> -> vector<8x128xf32>
    %c1 = arith.constant 1 : index
    %c0_5 = arith.constant 0 : index
    %c0_6 = arith.constant 0 : index
    %7 = vector.load %arg2[%c1, %c0_5, %c0_6] : memref<3x8x8xf32, #tpu.memory_space<vmem>>, vector<1x8x8xf32>
    %8 = vector.shape_cast %7 : vector<1x8x8xf32> to vector<8x8xf32>
    %cst_7 = arith.constant dense<0.000000e+00> : vector<8x128xf32>
    %9 = tpu.matmul %8, %1, %cst_7 {dimension_numbers = #tpu.dot_dimension_numbers<[1], [0], [0], [1], [0, 0, 1, 1], [], []>} : vector<8x8xf32>, vector<8x128xf32>, vector<8x128xf32> -> vector<8x128xf32>
    %10 = arith.addf %6, %9 : vector<8x128xf32>
    %c2 = arith.constant 2 : index
    %c0_8 = arith.constant 0 : index
    %c0_9 = arith.constant 0 : index
    %11 = vector.load %arg2[%c2, %c0_8, %c0_9] : memref<3x8x8xf32, #tpu.memory_space<vmem>>, vector<1x8x8xf32>
    %12 = vector.shape_cast %11 : vector<1x8x8xf32> to vector<8x8xf32>
    %cst_10 = arith.constant dense<0.000000e+00> : vector<8x128xf32>
    %13 = tpu.matmul %12, %3, %cst_10 {dimension_numbers = #tpu.dot_dimension_numbers<[1], [0], [0], [1], [0, 0, 1, 1], [], []>} : vector<8x8xf32>, vector<8x128xf32>, vector<8x128xf32> -> vector<8x128xf32>
    %14 = arith.addf %10, %13 : vector<8x128xf32>
    %15 = tpu.iota {dimensions = array<i32: 1>} : vector<1x128xi32>
    %c16_i32 = arith.constant 16 : i32
    %16 = vector.broadcast %c16_i32 : i32 to vector<1x128xi32>
    %17 = arith.cmpi slt, %15, %16 : vector<1x128xi32>
    %18 = arith.extui %17 : vector<1x128xi1> to vector<1x128xi32>
    %19 = arith.sitofp %18 : vector<1x128xi32> to vector<1x128xf32>
    %20 = vector.broadcast %19 : vector<1x128xf32> to vector<8x128xf32>
    %21 = arith.mulf %14, %20 : vector<8x128xf32>
    %cst_11 = arith.constant dense<0.000000e+00> : vector<8xf32>
    %22 = vector.multi_reduction <add>, %21, %cst_11 [1] : vector<8x128xf32> to vector<8xf32>
    %23 = vector.shape_cast %22 : vector<8xf32> to vector<8x1xf32>
    %c0_12 = arith.constant 0 : index
    %c0_13 = arith.constant 0 : index
    %c0_14 = arith.constant 0 : index
    %24 = vector.load %arg4[%c0_12, %c0_13, %c0_14] : memref<1x8x1xf32, #tpu.memory_space<vmem>>, vector<1x8x1xf32>
    %25 = vector.shape_cast %24 : vector<1x8x1xf32> to vector<8x1xf32>
    %26 = vector.shape_cast %23 : vector<8x1xf32> to vector<1x8x1xf32>
    tpu.vector_store %arg4[%c0_12, %c0_13, %c0_14], %26 {strides = array<i32>} : memref<1x8x1xf32, #tpu.memory_space<vmem>>, vector<1x8x1xf32>,
    %27 = arith.mulf %21, %14 : vector<8x128xf32>
    %cst_15 = arith.constant dense<0.000000e+00> : vector<8xf32>
    %28 = vector.multi_reduction <add>, %27, %cst_15 [1] : vector<8x128xf32> to vector<8xf32>
    %29 = vector.shape_cast %28 : vector<8xf32> to vector<8x1xf32>
    %c0_16 = arith.constant 0 : index
    %c0_17 = arith.constant 0 : index
    %c0_18 = arith.constant 0 : index
    %30 = vector.load %arg5[%c0_16, %c0_17, %c0_18] : memref<1x8x1xf32, #tpu.memory_space<vmem>>, vector<1x8x1xf32>
    %31 = vector.shape_cast %30 : vector<1x8x1xf32> to vector<8x1xf32>
    %32 = vector.shape_cast %29 : vector<8x1xf32> to vector<1x8x1xf32>
    tpu.vector_store %arg5[%c0_16, %c0_17, %c0_18], %32 {strides = array<i32>} : memref<1x8x1xf32, #tpu.memory_space<vmem>>, vector<1x8x1xf32>,
    %c0_19 = arith.constant 0 : index
    %c0_20 = arith.constant 0 : index
    %c0_21 = arith.constant 0 : index
    %33 = vector.load %arg3[%c0_19, %c0_20, %c0_21] : memref<1x8x128xf32, #tpu.memory_space<vmem>>, vector<1x8x128xf32>
    %34 = vector.shape_cast %33 : vector<1x8x128xf32> to vector<8x128xf32>
    %35 = vector.shape_cast %14 : vector<8x128xf32> to vector<1x8x128xf32>
    tpu.vector_store %arg3[%c0_19, %c0_20, %c0_21], %35 {strides = array<i32>} : memref<1x8x128xf32, #tpu.memory_space<vmem>>, vector<1x8x128xf32>,
    return
  }
  func.func @transform_0(%arg0: i32) -> (i32, i32, i32) {
    %c0_i32 = arith.constant 0 : i32
    %c0_i32_0 = arith.constant 0 : i32
    %c0_i32_1 = arith.constant 0 : i32
    return %arg0, %c0_i32, %c0_i32_0 : i32, i32, i32
  }
  func.func @transform_1(%arg0: i32) -> (i32, i32, i32) {
    %c0_i32 = arith.constant 0 : i32
    %c0_i32_0 = arith.constant 0 : i32
    %c0_i32_1 = arith.constant 0 : i32
    %c0_i32_2 = arith.constant 0 : i32
    return %c0_i32, %c0_i32_0, %c0_i32_1 : i32, i32, i32
  }
  func.func @transform_2(%arg0: i32) -> (i32, i32, i32) {
    %c0_i32 = arith.constant 0 : i32
    %c0_i32_0 = arith.constant 0 : i32
    %c0_i32_1 = arith.constant 0 : i32
    return %arg0, %c0_i32, %c0_i32_0 : i32, i32, i32
  }
  func.func @transform_3(%arg0: i32) -> (i32, i32, i32) {
    %c0_i32 = arith.constant 0 : i32
    %c0_i32_0 = arith.constant 0 : i32
    %c0_i32_1 = arith.constant 0 : i32
    return %arg0, %c0_i32, %c0_i32_0 : i32, i32, i32
  }
  func.func @transform_4(%arg0: i32) -> (i32, i32, i32) {
    %c0_i32 = arith.constant 0 : i32
    %c0_i32_0 = arith.constant 0 : i32
    %c0_i32_1 = arith.constant 0 : i32
    return %arg0, %c0_i32, %c0_i32_0 : i32, i32, i32
  }
}

module attributes {stable_mosaic.version = 11 : i64} {
  func.func @conv2_kernel(%arg0: i32, %arg1: memref<1x8x128xf32, #tpu.memory_space<vmem>>, %arg2: memref<8x1xf32, #tpu.memory_space<vmem>>, %arg3: memref<8x1xf32, #tpu.memory_space<vmem>>, %arg4: memref<3x8x8xf32, #tpu.memory_space<vmem>>, %arg5: memref<1x8x128xf32, #tpu.memory_space<vmem>>, %arg6: memref<1x8x1xf32, #tpu.memory_space<vmem>>, %arg7: memref<1x8x1xf32, #tpu.memory_space<vmem>>) attributes {dimension_semantics = [#tpu.dimension_semantics<parallel>], iteration_bounds = array<i64: 2>, scalar_prefetch = 0 : i64, scratch_operands = 0 : i64, tpu.core_type = #tpu.core_type<tc>, window_params = [{transform_indices = @transform_0, window_bounds = array<i64: 1, 8, 128>}, {pipeline_mode = #tpu.pipeline_mode<synchronous>, transform_indices = @transform_1, window_bounds = array<i64: 8, 1>}, {pipeline_mode = #tpu.pipeline_mode<synchronous>, transform_indices = @transform_2, window_bounds = array<i64: 8, 1>}, {pipeline_mode = #tpu.pipeline_mode<synchronous>, transform_indices = @transform_3, window_bounds = array<i64: 3, 8, 8>}, {transform_indices = @transform_4, window_bounds = array<i64: 1, 8, 128>}, {transform_indices = @transform_5, window_bounds = array<i64: 1, 8, 1>}, {transform_indices = @transform_6, window_bounds = array<i64: 1, 8, 1>}]} {
    %0 = tpu.iota {dimensions = array<i32: 1>} : vector<1x128xi32>
    %c16_i32 = arith.constant 16 : i32
    %1 = vector.broadcast %c16_i32 : i32 to vector<1x128xi32>
    %2 = arith.cmpi slt, %0, %1 : vector<1x128xi32>
    %3 = arith.extui %2 : vector<1x128xi1> to vector<1x128xi32>
    %4 = arith.sitofp %3 : vector<1x128xi32> to vector<1x128xf32>
    %c0 = arith.constant 0 : index
    %c0_0 = arith.constant 0 : index
    %c0_1 = arith.constant 0 : index
    %5 = vector.load %arg1[%c0, %c0_0, %c0_1] : memref<1x8x128xf32, #tpu.memory_space<vmem>>, vector<1x8x128xf32>
    %6 = vector.shape_cast %5 : vector<1x8x128xf32> to vector<8x128xf32>
    %c0_2 = arith.constant 0 : index
    %c0_3 = arith.constant 0 : index
    %7 = vector.load %arg2[%c0_2, %c0_3] : memref<8x1xf32, #tpu.memory_space<vmem>>, vector<8x1xf32>
    %8 = vector.broadcast %7 : vector<8x1xf32> to vector<8x128xf32>
    %9 = arith.mulf %6, %8 : vector<8x128xf32>
    %c0_4 = arith.constant 0 : index
    %c0_5 = arith.constant 0 : index
    %10 = vector.load %arg3[%c0_4, %c0_5] : memref<8x1xf32, #tpu.memory_space<vmem>>, vector<8x1xf32>
    %11 = vector.broadcast %10 : vector<8x1xf32> to vector<8x128xf32>
    %12 = arith.addf %9, %11 : vector<8x128xf32>
    %cst = arith.constant 0.000000e+00 : f32
    %13 = vector.broadcast %cst : f32 to vector<8x128xf32>
    %14 = arith.maximumf %12, %13 : vector<8x128xf32>
    %15 = vector.broadcast %4 : vector<1x128xf32> to vector<8x128xf32>
    %16 = arith.mulf %14, %15 : vector<8x128xf32>
    %c1_i32 = arith.constant 1 : i32
    %17 = tpu.dynamic_rotate %16 by %c1_i32 dim 1 : vector<8x128xf32>, i32 -> vector<8x128xf32>
    %c127_i32 = arith.constant 127 : i32
    %18 = tpu.dynamic_rotate %16 by %c127_i32 dim 1 : vector<8x128xf32>, i32 -> vector<8x128xf32>
    %c0_6 = arith.constant 0 : index
    %c0_7 = arith.constant 0 : index
    %c0_8 = arith.constant 0 : index
    %19 = vector.load %arg4[%c0_6, %c0_7, %c0_8] : memref<3x8x8xf32, #tpu.memory_space<vmem>>, vector<1x8x8xf32>
    %20 = vector.shape_cast %19 : vector<1x8x8xf32> to vector<8x8xf32>
    %cst_9 = arith.constant dense<0.000000e+00> : vector<8x128xf32>
    %21 = tpu.matmul %20, %17, %cst_9 {dimension_numbers = #tpu.dot_dimension_numbers<[1], [0], [0], [1], [0, 0, 1, 1], [], []>} : vector<8x8xf32>, vector<8x128xf32>, vector<8x128xf32> -> vector<8x128xf32>
    %c1 = arith.constant 1 : index
    %c0_10 = arith.constant 0 : index
    %c0_11 = arith.constant 0 : index
    %22 = vector.load %arg4[%c1, %c0_10, %c0_11] : memref<3x8x8xf32, #tpu.memory_space<vmem>>, vector<1x8x8xf32>
    %23 = vector.shape_cast %22 : vector<1x8x8xf32> to vector<8x8xf32>
    %cst_12 = arith.constant dense<0.000000e+00> : vector<8x128xf32>
    %24 = tpu.matmul %23, %16, %cst_12 {dimension_numbers = #tpu.dot_dimension_numbers<[1], [0], [0], [1], [0, 0, 1, 1], [], []>} : vector<8x8xf32>, vector<8x128xf32>, vector<8x128xf32> -> vector<8x128xf32>
    %25 = arith.addf %21, %24 : vector<8x128xf32>
    %c2 = arith.constant 2 : index
    %c0_13 = arith.constant 0 : index
    %c0_14 = arith.constant 0 : index
    %26 = vector.load %arg4[%c2, %c0_13, %c0_14] : memref<3x8x8xf32, #tpu.memory_space<vmem>>, vector<1x8x8xf32>
    %27 = vector.shape_cast %26 : vector<1x8x8xf32> to vector<8x8xf32>
    %cst_15 = arith.constant dense<0.000000e+00> : vector<8x128xf32>
    %28 = tpu.matmul %27, %18, %cst_15 {dimension_numbers = #tpu.dot_dimension_numbers<[1], [0], [0], [1], [0, 0, 1, 1], [], []>} : vector<8x8xf32>, vector<8x128xf32>, vector<8x128xf32> -> vector<8x128xf32>
    %29 = arith.addf %25, %28 : vector<8x128xf32>
    %30 = vector.broadcast %4 : vector<1x128xf32> to vector<8x128xf32>
    %31 = arith.mulf %29, %30 : vector<8x128xf32>
    %cst_16 = arith.constant dense<0.000000e+00> : vector<8xf32>
    %32 = vector.multi_reduction <add>, %31, %cst_16 [1] : vector<8x128xf32> to vector<8xf32>
    %33 = vector.shape_cast %32 : vector<8xf32> to vector<8x1xf32>
    %c0_17 = arith.constant 0 : index
    %c0_18 = arith.constant 0 : index
    %c0_19 = arith.constant 0 : index
    %34 = vector.load %arg6[%c0_17, %c0_18, %c0_19] : memref<1x8x1xf32, #tpu.memory_space<vmem>>, vector<1x8x1xf32>
    %35 = vector.shape_cast %34 : vector<1x8x1xf32> to vector<8x1xf32>
    %36 = vector.shape_cast %33 : vector<8x1xf32> to vector<1x8x1xf32>
    tpu.vector_store %arg6[%c0_17, %c0_18, %c0_19], %36 {strides = array<i32>} : memref<1x8x1xf32, #tpu.memory_space<vmem>>, vector<1x8x1xf32>,
    %37 = arith.mulf %31, %29 : vector<8x128xf32>
    %cst_20 = arith.constant dense<0.000000e+00> : vector<8xf32>
    %38 = vector.multi_reduction <add>, %37, %cst_20 [1] : vector<8x128xf32> to vector<8xf32>
    %39 = vector.shape_cast %38 : vector<8xf32> to vector<8x1xf32>
    %c0_21 = arith.constant 0 : index
    %c0_22 = arith.constant 0 : index
    %c0_23 = arith.constant 0 : index
    %40 = vector.load %arg7[%c0_21, %c0_22, %c0_23] : memref<1x8x1xf32, #tpu.memory_space<vmem>>, vector<1x8x1xf32>
    %41 = vector.shape_cast %40 : vector<1x8x1xf32> to vector<8x1xf32>
    %42 = vector.shape_cast %39 : vector<8x1xf32> to vector<1x8x1xf32>
    tpu.vector_store %arg7[%c0_21, %c0_22, %c0_23], %42 {strides = array<i32>} : memref<1x8x1xf32, #tpu.memory_space<vmem>>, vector<1x8x1xf32>,
    %c0_24 = arith.constant 0 : index
    %c0_25 = arith.constant 0 : index
    %c0_26 = arith.constant 0 : index
    %43 = vector.load %arg5[%c0_24, %c0_25, %c0_26] : memref<1x8x128xf32, #tpu.memory_space<vmem>>, vector<1x8x128xf32>
    %44 = vector.shape_cast %43 : vector<1x8x128xf32> to vector<8x128xf32>
    %45 = vector.shape_cast %29 : vector<8x128xf32> to vector<1x8x128xf32>
    tpu.vector_store %arg5[%c0_24, %c0_25, %c0_26], %45 {strides = array<i32>} : memref<1x8x128xf32, #tpu.memory_space<vmem>>, vector<1x8x128xf32>,
    return
  }
  func.func @transform_0(%arg0: i32) -> (i32, i32, i32) {
    %c0_i32 = arith.constant 0 : i32
    %c0_i32_0 = arith.constant 0 : i32
    %c0_i32_1 = arith.constant 0 : i32
    return %arg0, %c0_i32, %c0_i32_0 : i32, i32, i32
  }
  func.func @transform_1(%arg0: i32) -> (i32, i32) {
    %c0_i32 = arith.constant 0 : i32
    %c0_i32_0 = arith.constant 0 : i32
    %c0_i32_1 = arith.constant 0 : i32
    return %c0_i32, %c0_i32_0 : i32, i32
  }
  func.func @transform_2(%arg0: i32) -> (i32, i32) {
    %c0_i32 = arith.constant 0 : i32
    %c0_i32_0 = arith.constant 0 : i32
    %c0_i32_1 = arith.constant 0 : i32
    return %c0_i32, %c0_i32_0 : i32, i32
  }
  func.func @transform_3(%arg0: i32) -> (i32, i32, i32) {
    %c0_i32 = arith.constant 0 : i32
    %c0_i32_0 = arith.constant 0 : i32
    %c0_i32_1 = arith.constant 0 : i32
    %c0_i32_2 = arith.constant 0 : i32
    return %c0_i32, %c0_i32_0, %c0_i32_1 : i32, i32, i32
  }
  func.func @transform_4(%arg0: i32) -> (i32, i32, i32) {
    %c0_i32 = arith.constant 0 : i32
    %c0_i32_0 = arith.constant 0 : i32
    %c0_i32_1 = arith.constant 0 : i32
    return %arg0, %c0_i32, %c0_i32_0 : i32, i32, i32
  }
  func.func @transform_5(%arg0: i32) -> (i32, i32, i32) {
    %c0_i32 = arith.constant 0 : i32
    %c0_i32_0 = arith.constant 0 : i32
    %c0_i32_1 = arith.constant 0 : i32
    return %arg0, %c0_i32, %c0_i32_0 : i32, i32, i32
  }
  func.func @transform_6(%arg0: i32) -> (i32, i32, i32) {
    %c0_i32 = arith.constant 0 : i32
    %c0_i32_0 = arith.constant 0 : i32
    %c0_i32_1 = arith.constant 0 : i32
    return %arg0, %c0_i32, %c0_i32_0 : i32, i32, i32
  }
}

module attributes {stable_mosaic.version = 11 : i64} {
  func.func @out_kernel(%arg0: i32, %arg1: memref<1x8x128xf32, #tpu.memory_space<vmem>>, %arg2: memref<1x8x128xf32, #tpu.memory_space<vmem>>, %arg3: memref<8x1xf32, #tpu.memory_space<vmem>>, %arg4: memref<8x1xf32, #tpu.memory_space<vmem>>, %arg5: memref<1x8x128xf32, #tpu.memory_space<vmem>>) attributes {dimension_semantics = [#tpu.dimension_semantics<parallel>], iteration_bounds = array<i64: 2>, scalar_prefetch = 0 : i64, scratch_operands = 0 : i64, tpu.core_type = #tpu.core_type<tc>, window_params = [{transform_indices = @transform_0, window_bounds = array<i64: 1, 8, 128>}, {transform_indices = @transform_1, window_bounds = array<i64: 1, 8, 128>}, {pipeline_mode = #tpu.pipeline_mode<synchronous>, transform_indices = @transform_2, window_bounds = array<i64: 8, 1>}, {pipeline_mode = #tpu.pipeline_mode<synchronous>, transform_indices = @transform_3, window_bounds = array<i64: 8, 1>}, {transform_indices = @transform_4, window_bounds = array<i64: 1, 8, 128>}]} {
    %c0 = arith.constant 0 : index
    %c0_0 = arith.constant 0 : index
    %c0_1 = arith.constant 0 : index
    %0 = vector.load %arg1[%c0, %c0_0, %c0_1] : memref<1x8x128xf32, #tpu.memory_space<vmem>>, vector<1x8x128xf32>
    %1 = vector.shape_cast %0 : vector<1x8x128xf32> to vector<8x128xf32>
    %c0_2 = arith.constant 0 : index
    %c0_3 = arith.constant 0 : index
    %2 = vector.load %arg3[%c0_2, %c0_3] : memref<8x1xf32, #tpu.memory_space<vmem>>, vector<8x1xf32>
    %3 = vector.broadcast %2 : vector<8x1xf32> to vector<8x128xf32>
    %4 = arith.mulf %1, %3 : vector<8x128xf32>
    %c0_4 = arith.constant 0 : index
    %c0_5 = arith.constant 0 : index
    %5 = vector.load %arg4[%c0_4, %c0_5] : memref<8x1xf32, #tpu.memory_space<vmem>>, vector<8x1xf32>
    %6 = vector.broadcast %5 : vector<8x1xf32> to vector<8x128xf32>
    %7 = arith.addf %4, %6 : vector<8x128xf32>
    %c0_6 = arith.constant 0 : index
    %c0_7 = arith.constant 0 : index
    %c0_8 = arith.constant 0 : index
    %8 = vector.load %arg2[%c0_6, %c0_7, %c0_8] : memref<1x8x128xf32, #tpu.memory_space<vmem>>, vector<1x8x128xf32>
    %9 = vector.shape_cast %8 : vector<1x8x128xf32> to vector<8x128xf32>
    %10 = arith.addf %7, %9 : vector<8x128xf32>
    %cst = arith.constant 0.000000e+00 : f32
    %11 = vector.broadcast %cst : f32 to vector<8x128xf32>
    %12 = arith.maximumf %10, %11 : vector<8x128xf32>
    %c0_9 = arith.constant 0 : index
    %c0_10 = arith.constant 0 : index
    %c0_11 = arith.constant 0 : index
    %13 = vector.load %arg5[%c0_9, %c0_10, %c0_11] : memref<1x8x128xf32, #tpu.memory_space<vmem>>, vector<1x8x128xf32>
    %14 = vector.shape_cast %13 : vector<1x8x128xf32> to vector<8x128xf32>
    %15 = vector.shape_cast %12 : vector<8x128xf32> to vector<1x8x128xf32>
    tpu.vector_store %arg5[%c0_9, %c0_10, %c0_11], %15 {strides = array<i32>} : memref<1x8x128xf32, #tpu.memory_space<vmem>>, vector<1x8x128xf32>,
    return
  }
  func.func @transform_0(%arg0: i32) -> (i32, i32, i32) {
    %c0_i32 = arith.constant 0 : i32
    %c0_i32_0 = arith.constant 0 : i32
    %c0_i32_1 = arith.constant 0 : i32
    return %arg0, %c0_i32, %c0_i32_0 : i32, i32, i32
  }
  func.func @transform_1(%arg0: i32) -> (i32, i32, i32) {
    %c0_i32 = arith.constant 0 : i32
    %c0_i32_0 = arith.constant 0 : i32
    %c0_i32_1 = arith.constant 0 : i32
    return %arg0, %c0_i32, %c0_i32_0 : i32, i32, i32
  }
  func.func @transform_2(%arg0: i32) -> (i32, i32) {
    %c0_i32 = arith.constant 0 : i32
    %c0_i32_0 = arith.constant 0 : i32
    %c0_i32_1 = arith.constant 0 : i32
    return %c0_i32, %c0_i32_0 : i32, i32
  }
  func.func @transform_3(%arg0: i32) -> (i32, i32) {
    %c0_i32 = arith.constant 0 : i32
    %c0_i32_0 = arith.constant 0 : i32
    %c0_i32_1 = arith.constant 0 : i32
    return %c0_i32, %c0_i32_0 : i32, i32
  }
  func.func @transform_4(%arg0: i32) -> (i32, i32, i32) {
    %c0_i32 = arith.constant 0 : i32
    %c0_i32_0 = arith.constant 0 : i32
    %c0_i32_1 = arith.constant 0 : i32
    return %arg0, %c0_i32, %c0_i32_0 : i32, i32, i32
  }
}

</mosaic_0001>

<llo_original>
// kernel: residual_block.5
$region0: #{residual_block.5}
  #allocation0 [shape = 'u32[]', space=smem, size = 0x4, offset = 0x4, fixed_abs, tag = 'smem constant byte address 0x4 - core index']
  #allocation1 [shape = 'u32[144,128]{1,0:T(1,128)}', space=vmem, size = 0x12000, scoped, tag = 'internal scratch']
  %s0 = inlined_call_operand.vmem [shape: f32[2,8,128], index: 0, kind: input, shape index: {}]
  %s1 = inlined_call_operand.vmem [shape: f32[2,8,128], index: 1, kind: input, shape index: {}]
  %s2 = inlined_call_operand.vmem [shape: f32[8,1], index: 2, kind: input, shape index: {}]
  %s3 = inlined_call_operand.vmem [shape: f32[8,1], index: 3, kind: input, shape index: {}]
  %s4 = inlined_call_operand.vmem [shape: f32[2,8,128], index: 4, kind: output, shape index: {}]
  %s5 = sld [smem:[#allocation0]]
  $region49: #{residual_block.5} parent=0
    _
  %s7 = ssub.s32 1, %s5
  %s8 = scalar_select 0, %s7, %s5
  loop: start=0, step=1, limit=4
  $region2: #{residual_block.5} parent=0 // loop_pre_header
    _
  $region3: #{residual_block.5} parent=0 // loop_header
    %s10 = sphi 0, %s14
    %p11 = scmp.ge.s32.totalorder %s10, 4
    %s20 = sphi 0, %s22
    %s23 = sphi 0, %s20
    %s24 = sphi 0, %s23
    %s40 = sphi 0, %s24
    %s46 = sphi 0, %s48
    %s49 = sphi 0, %s46
    %s50 = sphi 0, %s49
    %s66 = sphi 0, %s50
    %s70 = sphi 0, %s70
    %s72 = sphi 0, %s70
    %s73 = sphi 0, %s72
    %s87 = sphi 0, %s73
    %s91 = sphi 0, %s91
    %s93 = sphi 0, %s91
    %s94 = sphi 0, %s93
    %s108 = sphi 0, %s94
    %s114 = sphi 0, %s116
    %s117 = sphi 0, %s114
    %s118 = sphi 0, %s117
    %s134 = sphi 0, %s118
  $region4: #{residual_block.5} parent=0 // loop_header_branch
    %13 = sbr.rel (%p11) target = $region8
  $region5: #{residual_block.5} parent=0 // loop_body
    %s15 = ssub.s32 %s10, 1
    %s16 = ssub.s32 %s10, 2
    %s17 = sadd.s32 %s10, 1
    %s18 = ssub.s32 %s10, %s17
    %p19 = scmp.eq.s32.totalorder %s18, 0
    %s21 = sadd.s32 %s20, 1
    %s22 = scalar_select %p19, %s20, %s21
    %p25 = pneg %p19
    %p26 = scmp.eq.s32.totalorder %s10, 1
    %p27 = por %p25, %p26
    %p28 = scmp.ne.s32.totalorder %s20, %s23
    %p29 = scmp.eq.s32.totalorder %s10, 0
    %p30 = por %p28, %p29
    %p31 = scmp.ne.s32.totalorder %s20, %s23
    %p32 = scmp.eq.s32.totalorder %s15, 1
    %p33 = por %p31, %p32
    %p34 = scmp.ne.s32.totalorder %s23, %s24
    %p35 = scmp.eq.s32.totalorder %s15, 0
    %p36 = por %p34, %p35
    %p37 = scmp.ne.s32.totalorder %s23, %s24
    %p38 = scmp.eq.s32.totalorder %s16, 1
    %p39 = por %p37, %p38
    %p41 = scmp.ne.s32.totalorder %s24, %s40
    %p42 = scmp.eq.s32.totalorder %s16, 0
    %p43 = por %p41, %p42
    %s44 = ssub.s32 %s10, %s17
    %p45 = scmp.eq.s32.totalorder %s44, 0
    %s47 = sadd.s32 %s46, 1
    %s48 = scalar_select %p45, %s46, %s47
    %p51 = pneg %p45
    %p52 = scmp.eq.s32.totalorder %s10, 1
    %p53 = por %p51, %p52
    %p54 = scmp.ne.s32.totalorder %s46, %s49
    %p55 = scmp.eq.s32.totalorder %s10, 0
    %p56 = por %p54, %p55
    %p57 = scmp.ne.s32.totalorder %s46, %s49
    %p58 = scmp.eq.s32.totalorder %s15, 1
    %p59 = por %p57, %p58
    %p60 = scmp.ne.s32.totalorder %s49, %s50
    %p61 = scmp.eq.s32.totalorder %s15, 0
    %p62 = por %p60, %p61
    %p63 = scmp.ne.s32.totalorder %s49, %s50
    %p64 = scmp.eq.s32.totalorder %s16, 1
    %p65 = por %p63, %p64
    %p67 = scmp.ne.s32.totalorder %s50, %s66
    %p68 = scmp.eq.s32.totalorder %s16, 0
    %p69 = por %p67, %p68
    %s71 = sadd.s32 %s70, 1
    %p74 = scmp.eq.s32.totalorder %s10, 1
    %p75 = scmp.ne.s32.totalorder %s70, %s72
    %p76 = scmp.eq.s32.totalorder %s10, 0
    %p77 = por %p75, %p76
    %p78 = scmp.ne.s32.totalorder %s70, %s72
    %p79 = scmp.eq.s32.totalorder %s15, 1
    %p80 = por %p78, %p79
    %p81 = scmp.ne.s32.totalorder %s72, %s73
    %p82 = scmp.eq.s32.totalorder %s15, 0
    %p83 = por %p81, %p82
    %p84 = scmp.ne.s32.totalorder %s72, %s73
    %p85 = scmp.eq.s32.totalorder %s16, 1
    %p86 = por %p84, %p85
    %p88 = scmp.ne.s32.totalorder %s73, %s87
    %p89 = scmp.eq.s32.totalorder %s16, 0
    %p90 = por %p88, %p89
    %s92 = sadd.s32 %s91, 1
    %p95 = scmp.eq.s32.totalorder %s10, 1
    %p96 = scmp.ne.s32.totalorder %s91, %s93
    %p97 = scmp.eq.s32.totalorder %s10, 0
    %p98 = por %p96, %p97
    %p99 = scmp.ne.s32.totalorder %s91, %s93
    %p100 = scmp.eq.s32.totalorder %s15, 1
    %p101 = por %p99, %p100
    %p102 = scmp.ne.s32.totalorder %s93, %s94
    %p103 = scmp.eq.s32.totalorder %s15, 0
    %p104 = por %p102, %p103
    %p105 = scmp.ne.s32.totalorder %s93, %s94
    %p106 = scmp.eq.s32.totalorder %s16, 1
    %p107 = por %p105, %p106
    %p109 = scmp.ne.s32.totalorder %s94, %s108
    %p110 = scmp.eq.s32.totalorder %s16, 0
    %p111 = por %p109, %p110
    %s112 = ssub.s32 %s10, %s17
    %p113 = scmp.eq.s32.totalorder %s112, 0
    %s115 = sadd.s32 %s114, 1
    %s116 = scalar_select %p113, %s114, %s115
    %p119 = pneg %p113
    %p120 = scmp.eq.s32.totalorder %s10, 1
    %p121 = por %p119, %p120
    %p122 = scmp.ne.s32.totalorder %s114, %s117
    %p123 = scmp.eq.s32.totalorder %s10, 0
    %p124 = por %p122, %p123
    %p125 = scmp.ne.s32.totalorder %s114, %s117
    %p126 = scmp.eq.s32.totalorder %s15, 1
    %p127 = por %p125, %p126
    %p128 = scmp.ne.s32.totalorder %s117, %s118
    %p129 = scmp.eq.s32.totalorder %s15, 0
    %p130 = por %p128, %p129
    %p131 = scmp.ne.s32.totalorder %s117, %s118
    %p132 = scmp.eq.s32.totalorder %s16, 1
    %p133 = por %p131, %p132
    %p135 = scmp.ne.s32.totalorder %s118, %s134
    %p136 = scmp.eq.s32.totalorder %s16, 0
    %p137 = por %p135, %p136
    %p138 = scmp.le.s32.totalorder 1, %s10
    %p139 = scmp.lt.s32.totalorder %s10, 3
    %p140 = pnand %p138, %p139
    %p141 = pneg %p140
    // Predicated region
    $region9: #{residual_block.5} parent=5 // pred_check
      _
    $region10: #{residual_block.5} parent=5 // pred_check_branch
      %143 = sbr.rel (%p140) target = $region12
    $region11: #{residual_block.5} parent=5 // pred_region
      %s144 = ssub.s32 %s10, 1
      // Predicated region
      $region13: #{residual_block.5} parent=11 // pred_check
        %p145 = pneg %p83
      $region14: #{residual_block.5} parent=11 // pred_check_branch
        %147 = sbr.rel (%p145) target = $region16
      $region15: #{residual_block.5} parent=11 // pred_region
        _
      $region16: #{residual_block.5} parent=11 // pred_fallthru
        _
      // Predicated region
      $region17: #{residual_block.5} parent=11 // pred_check
        %p148 = pneg %p104
      $region18: #{residual_block.5} parent=11 // pred_check_branch
        %150 = sbr.rel (%p148) target = $region20
      $region19: #{residual_block.5} parent=11 // pred_region
        _
      $region20: #{residual_block.5} parent=11 // pred_fallthru
        _
    $region12: #{residual_block.5} parent=5 // pred_fallthru
      _
    %p151 = scmp.lt.s32.totalorder %s10, 2
    // Predicated region
    $region21: #{residual_block.5} parent=5 // pred_check
      %p152 = pneg %p151
    $region22: #{residual_block.5} parent=5 // pred_check_branch
      %154 = sbr.rel (%p152) target = $region24
    $region23: #{residual_block.5} parent=5 // pred_region
      // Predicated region
      $region25: #{residual_block.5} parent=23 // pred_check
        %p155 = pneg %p30
      $region26: #{residual_block.5} parent=23 // pred_check_branch
        %157 = sbr.rel (%p155) target = $region28
      $region27: #{residual_block.5} parent=23 // pred_region
        %p158 = scmp.lt.s32.totalorder %s10, 1
        %s159 = scalar_select %p158, %s10, 1
        %s160 = smul.addr %s159, 8
        %s161 = scalar_lea.vmem %s0, %s160
      $region28: #{residual_block.5} parent=23 // pred_fallthru
        _
      // Predicated region
      $region29: #{residual_block.5} parent=23 // pred_check
        %p162 = pneg %p56
      $region30: #{residual_block.5} parent=23 // pred_check_branch
        %164 = sbr.rel (%p162) target = $region32
      $region31: #{residual_block.5} parent=23 // pred_region
        %p165 = scmp.lt.s32.totalorder %s10, 1
        %s166 = scalar_select %p165, %s10, 1
        %s167 = smul.addr %s166, 8
        %s168 = scalar_lea.vmem %s1, %s167
      $region32: #{residual_block.5} parent=23 // pred_fallthru
        _
    $region24: #{residual_block.5} parent=5 // pred_fallthru
      _
    %p169 = scmp.le.s32.totalorder 1, %s10
    %p170 = scmp.lt.s32.totalorder %s10, 3
    %p171 = pnand %p169, %p170
    %p172 = pneg %p171
    // Predicated region
    $region33: #{residual_block.5} parent=5 // pred_check
      _
    $region34: #{residual_block.5} parent=5 // pred_check_branch
      %174 = sbr.rel (%p171) target = $region36
    $region35: #{residual_block.5} parent=5 // pred_region
      %s175 = ssub.s32 %s10, 1
      %p176 = scmp.lt.s32.totalorder %s15, 1
      %s177 = scalar_select %p176, %s15, 1
      %s178 = smul.addr %s177, 8
      %s179 = scalar_lea.vmem %s0, %s178
      %p180 = pneg %p36
      %p181 = pneg %p33
      %p182 = scmp.lt.s32.totalorder %s15, 1
      %s183 = scalar_select %p182, %s15, 1
      %s184 = smul.addr %s183, 8
      %s185 = scalar_lea.vmem %s1, %s184
      %p186 = pneg %p62
      %p187 = pneg %p59
      %p188 = pneg %p83
      %p189 = pneg %p80
      %p190 = pneg %p104
      %p191 = pneg %p101
      %p192 = pneg %p130
      %p193 = pneg %p127
      %p194 = scmp.lt.s32.totalorder %s15, 1
      %s195 = scalar_select %p194, %s15, 1
      %s196 = smul.addr %s195, 8
      %s197 = scalar_lea.vmem %s4, %s196
      %p198 = scmp.lt.s32.totalorder %s15, 1
      %s199 = scalar_select %p198, %s15, 1
      %s200 = smul.addr %s199, 8
      %s201 = scalar_lea.vmem %s0, %s200
      %p202 = scmp.lt.s32.totalorder %s15, 1
      %s203 = scalar_select %p202, %s15, 1
      %s204 = smul.addr %s203, 8
      %s205 = scalar_lea.vmem %s1, %s204
      %p206 = scmp.lt.s32.totalorder %s15, 1
      %s207 = scalar_select %p206, %s15, 1
      %s208 = smul.addr %s207, 8
      %s209 = scalar_lea.vmem %s4, %s208
      %v210 = vld [vmem:[%s201] sm:$0xff]
      %v211 = vld [vmem:[%s2] sm:$0xff]
      %213 = vset.pattern.permute.xlu0 0
      %214 = vperm.xlu0 %213, %v211
      %v215 = vpop.permute.xlu0 %214
      %v217 = vmul.f32 %v210, %v215
      %v218 = vld [vmem:[%s3] sm:$0xff]
      %220 = vset.pattern.permute.xlu0 0
      %221 = vperm.xlu0 %220, %v218
      %v222 = vpop.permute.xlu0 %221
      %v224 = vadd.f32 %v217, %v222
      %v225 = vld [vmem:[%s205] sm:$0xff]
      %v226 = vadd.f32 %v224, %v225
      %v227 = vmax.f32 %v226, 0.0
      %228 = vst [vmem:[%s209] sm:$0xff] %v227
      %p229 = scmp.lt.s32.totalorder %s15, 1
      %s230 = scalar_select %p229, %s15, 1
      %s231 = smul.addr %s230, 8
      %s232 = scalar_lea.vmem %s4, %s231
      // Predicated region
      $region37: #{residual_block.5} parent=35 // pred_check
        %p233 = pneg %p127
      $region38: #{residual_block.5} parent=35 // pred_check_branch
        %235 = sbr.rel (%p233) target = $region40
      $region39: #{residual_block.5} parent=35 // pred_region
        _
      $region40: #{residual_block.5} parent=35 // pred_fallthru
        _
    $region36: #{residual_block.5} parent=5 // pred_fallthru
      _
    %p236 = scmp.le.s32.totalorder 2, %s10
    // Predicated region
    $region41: #{residual_block.5} parent=5 // pred_check
      %p237 = pneg %p236
    $region42: #{residual_block.5} parent=5 // pred_check_branch
      %239 = sbr.rel (%p237) target = $region44
    $region43: #{residual_block.5} parent=5 // pred_region
      %s240 = ssub.s32 %s10, 2
      // Predicated region
      $region45: #{residual_block.5} parent=43 // pred_check
        %p241 = pneg %p133
      $region46: #{residual_block.5} parent=43 // pred_check_branch
        %243 = sbr.rel (%p241) target = $region48
      $region47: #{residual_block.5} parent=43 // pred_region
        %p244 = scmp.lt.s32.totalorder %s16, 1
        %s245 = scalar_select %p244, %s16, 1
        %s246 = smul.addr %s245, 8
        %s247 = scalar_lea.vmem %s4, %s246
      $region48: #{residual_block.5} parent=43 // pred_fallthru
        _
    $region44: #{residual_block.5} parent=5 // pred_fallthru
      _
  $region6: #{residual_block.5} parent=0 // loop_footer
    %s14 = sadd.s32 1, %s10
  $region7: #{residual_block.5} parent=0 // loop_footer_branch
    %9 = sbr.rel target = $region3
  $region8: #{residual_block.5} parent=0 // loop_exit
    _

// kernel: residual_block.3
$region0: #{residual_block.3}
  #allocation0 [shape = 'u32[]', space=smem, size = 0x4, offset = 0x4, fixed_abs, tag = 'smem constant byte address 0x4 - core index']
  #allocation1 [shape = 'u32[144,128]{1,0:T(1,128)}', space=vmem, size = 0x12000, scoped, tag = 'internal scratch']
  %s0 = inlined_call_operand.vmem [shape: f32[2,8,128], index: 0, kind: input, shape index: {}]
  %s1 = inlined_call_operand.vmem [shape: f32[3,8,8], index: 1, kind: input, shape index: {}]
  %s2 = inlined_call_operand.vmem [shape: f32[2,8,128], index: 2, kind: output, shape index: {0}]
  %s3 = inlined_call_operand.vmem [shape: f32[2,8,1], index: 3, kind: output, shape index: {1}]
  %s4 = inlined_call_operand.vmem [shape: f32[2,8,1], index: 4, kind: output, shape index: {2}]
  %5 = xla_tuple %s2, %s3, %s4
  %s6 = sld [smem:[#allocation0]]
  $region57: #{residual_block.3} parent=0
    _
  %s8 = ssub.s32 1, %s6
  %s9 = scalar_select 0, %s8, %s6
  loop: start=0, step=1, limit=4
  $region2: #{residual_block.3} parent=0 // loop_pre_header
    _
  $region3: #{residual_block.3} parent=0 // loop_header
    %s11 = sphi 0, %s15
    %p12 = scmp.ge.s32.totalorder %s11, 4
    %s21 = sphi 0, %s23
    %s24 = sphi 0, %s21
    %s25 = sphi 0, %s24
    %s41 = sphi 0, %s25
    %s45 = sphi 0, %s45
    %s47 = sphi 0, %s45
    %s48 = sphi 0, %s47
    %s62 = sphi 0, %s48
    %s68 = sphi 0, %s70
    %s71 = sphi 0, %s68
    %s72 = sphi 0, %s71
    %s88 = sphi 0, %s72
    %s94 = sphi 0, %s96
    %s97 = sphi 0, %s94
    %s98 = sphi 0, %s97
    %s114 = sphi 0, %s98
    %s120 = sphi 0, %s122
    %s123 = sphi 0, %s120
    %s124 = sphi 0, %s123
    %s140 = sphi 0, %s124
  $region4: #{residual_block.3} parent=0 // loop_header_branch
    %14 = sbr.rel (%p12) target = $region8
  $region5: #{residual_block.3} parent=0 // loop_body
    %s16 = ssub.s32 %s11, 1
    %s17 = ssub.s32 %s11, 2
    %s18 = sadd.s32 %s11, 1
    %s19 = ssub.s32 %s11, %s18
    %p20 = scmp.eq.s32.totalorder %s19, 0
    %s22 = sadd.s32 %s21, 1
    %s23 = scalar_select %p20, %s21, %s22
    %p26 = pneg %p20
    %p27 = scmp.eq.s32.totalorder %s11, 1
    %p28 = por %p26, %p27
    %p29 = scmp.ne.s32.totalorder %s21, %s24
    %p30 = scmp.eq.s32.totalorder %s11, 0
    %p31 = por %p29, %p30
    %p32 = scmp.ne.s32.totalorder %s21, %s24
    %p33 = scmp.eq.s32.totalorder %s16, 1
    %p34 = por %p32, %p33
    %p35 = scmp.ne.s32.totalorder %s24, %s25
    %p36 = scmp.eq.s32.totalorder %s16, 0
    %p37 = por %p35, %p36
    %p38 = scmp.ne.s32.totalorder %s24, %s25
    %p39 = scmp.eq.s32.totalorder %s17, 1
    %p40 = por %p38, %p39
    %p42 = scmp.ne.s32.totalorder %s25, %s41
    %p43 = scmp.eq.s32.totalorder %s17, 0
    %p44 = por %p42, %p43
    %s46 = sadd.s32 %s45, 1
    %p49 = scmp.eq.s32.totalorder %s11, 1
    %p50 = scmp.ne.s32.totalorder %s45, %s47
    %p51 = scmp.eq.s32.totalorder %s11, 0
    %p52 = por %p50, %p51
    %p53 = scmp.ne.s32.totalorder %s45, %s47
    %p54 = scmp.eq.s32.totalorder %s16, 1
    %p55 = por %p53, %p54
    %p56 = scmp.ne.s32.totalorder %s47, %s48
    %p57 = scmp.eq.s32.totalorder %s16, 0
    %p58 = por %p56, %p57
    %p59 = scmp.ne.s32.totalorder %s47, %s48
    %p60 = scmp.eq.s32.totalorder %s17, 1
    %p61 = por %p59, %p60
    %p63 = scmp.ne.s32.totalorder %s48, %s62
    %p64 = scmp.eq.s32.totalorder %s17, 0
    %p65 = por %p63, %p64
    %s66 = ssub.s32 %s11, %s18
    %p67 = scmp.eq.s32.totalorder %s66, 0
    %s69 = sadd.s32 %s68, 1
    %s70 = scalar_select %p67, %s68, %s69
    %p73 = pneg %p67
    %p74 = scmp.eq.s32.totalorder %s11, 1
    %p75 = por %p73, %p74
    %p76 = scmp.ne.s32.totalorder %s68, %s71
    %p77 = scmp.eq.s32.totalorder %s11, 0
    %p78 = por %p76, %p77
    %p79 = scmp.ne.s32.totalorder %s68, %s71
    %p80 = scmp.eq.s32.totalorder %s16, 1
    %p81 = por %p79, %p80
    %p82 = scmp.ne.s32.totalorder %s71, %s72
    %p83 = scmp.eq.s32.totalorder %s16, 0
    %p84 = por %p82, %p83
    %p85 = scmp.ne.s32.totalorder %s71, %s72
    %p86 = scmp.eq.s32.totalorder %s17, 1
    %p87 = por %p85, %p86
    %p89 = scmp.ne.s32.totalorder %s72, %s88
    %p90 = scmp.eq.s32.totalorder %s17, 0
    %p91 = por %p89, %p90
    %s92 = ssub.s32 %s11, %s18
    %p93 = scmp.eq.s32.totalorder %s92, 0
    %s95 = sadd.s32 %s94, 1
    %s96 = scalar_select %p93, %s94, %s95
    %p99 = pneg %p93
    %p100 = scmp.eq.s32.totalorder %s11, 1
    %p101 = por %p99, %p100
    %p102 = scmp.ne.s32.totalorder %s94, %s97
    %p103 = scmp.eq.s32.totalorder %s11, 0
    %p104 = por %p102, %p103
    %p105 = scmp.ne.s32.totalorder %s94, %s97
    %p106 = scmp.eq.s32.totalorder %s16, 1
    %p107 = por %p105, %p106
    %p108 = scmp.ne.s32.totalorder %s97, %s98
    %p109 = scmp.eq.s32.totalorder %s16, 0
    %p110 = por %p108, %p109
    %p111 = scmp.ne.s32.totalorder %s97, %s98
    %p112 = scmp.eq.s32.totalorder %s17, 1
    %p113 = por %p111, %p112
    %p115 = scmp.ne.s32.totalorder %s98, %s114
    %p116 = scmp.eq.s32.totalorder %s17, 0
    %p117 = por %p115, %p116
    %s118 = ssub.s32 %s11, %s18
    %p119 = scmp.eq.s32.totalorder %s118, 0
    %s121 = sadd.s32 %s120, 1
    %s122 = scalar_select %p119, %s120, %s121
    %p125 = pneg %p119
    %p126 = scmp.eq.s32.totalorder %s11, 1
    %p127 = por %p125, %p126
    %p128 = scmp.ne.s32.totalorder %s120, %s123
    %p129 = scmp.eq.s32.totalorder %s11, 0
    %p130 = por %p128, %p129
    %p131 = scmp.ne.s32.totalorder %s120, %s123
    %p132 = scmp.eq.s32.totalorder %s16, 1
    %p133 = por %p131, %p132
    %p134 = scmp.ne.s32.totalorder %s123, %s124
    %p135 = scmp.eq.s32.totalorder %s16, 0
    %p136 = por %p134, %p135
    %p137 = scmp.ne.s32.totalorder %s123, %s124
    %p138 = scmp.eq.s32.totalorder %s17, 1
    %p139 = por %p137, %p138
    %p141 = scmp.ne.s32.totalorder %s124, %s140
    %p142 = scmp.eq.s32.totalorder %s17, 0
    %p143 = por %p141, %p142
    %p144 = scmp.le.s32.totalorder 1, %s11
    %p145 = scmp.lt.s32.totalorder %s11, 3
    %p146 = pnand %p144, %p145
    %p147 = pneg %p146
    // Predicated region
    $region9: #{residual_block.3} parent=5 // pred_check
      _
    $region10: #{residual_block.3} parent=5 // pred_check_branch
      %149 = sbr.rel (%p146) target = $region12
    $region11: #{residual_block.3} parent=5 // pred_region
      %s150 = ssub.s32 %s11, 1
      // Predicated region
      $region13: #{residual_block.3} parent=11 // pred_check
        %p151 = pneg %p58
      $region14: #{residual_block.3} parent=11 // pred_check_branch
        %153 = sbr.rel (%p151) target = $region16
      $region15: #{residual_block.3} parent=11 // pred_region
        _
      $region16: #{residual_block.3} parent=11 // pred_fallthru
        _
    $region12: #{residual_block.3} parent=5 // pred_fallthru
      _
    %p154 = scmp.lt.s32.totalorder %s11, 2
    // Predicated region
    $region17: #{residual_block.3} parent=5 // pred_check
      %p155 = pneg %p154
    $region18: #{residual_block.3} parent=5 // pred_check_branch
      %157 = sbr.rel (%p155) target = $region20
    $region19: #{residual_block.3} parent=5 // pred_region
      // Predicated region
      $region21: #{residual_block.3} parent=19 // pred_check
        %p158 = pneg %p31
      $region22: #{residual_block.3} parent=19 // pred_check_branch
        %160 = sbr.rel (%p158) target = $region24
      $region23: #{residual_block.3} parent=19 // pred_region
        %p161 = scmp.lt.s32.totalorder %s11, 1
        %s162 = scalar_select %p161, %s11, 1
        %s163 = smul.addr %s162, 8
        %s164 = scalar_lea.vmem %s0, %s163
      $region24: #{residual_block.3} parent=19 // pred_fallthru
        _
    $region20: #{residual_block.3} parent=5 // pred_fallthru
      _
    %p165 = scmp.le.s32.totalorder 1, %s11
    %p166 = scmp.lt.s32.totalorder %s11, 3
    %p167 = pnand %p165, %p166
    %p168 = pneg %p167
    // Predicated region
    $region25: #{residual_block.3} parent=5 // pred_check
      _
    $region26: #{residual_block.3} parent=5 // pred_check_branch
      %170 = sbr.rel (%p167) target = $region28
    $region27: #{residual_block.3} parent=5 // pred_region
      %s171 = ssub.s32 %s11, 1
      %p172 = scmp.lt.s32.totalorder %s16, 1
      %s173 = scalar_select %p172, %s16, 1
      %s174 = smul.addr %s173, 8
      %s175 = scalar_lea.vmem %s0, %s174
      %p176 = pneg %p37
      %p177 = pneg %p34
      %p178 = pneg %p58
      %p179 = pneg %p55
      %p180 = pneg %p84
      %p181 = pneg %p81
      %p182 = scmp.lt.s32.totalorder %s16, 1
      %s183 = scalar_select %p182, %s16, 1
      %s184 = smul.addr %s183, 8
      %s185 = scalar_lea.vmem %s2, %s184
      %p186 = pneg %p110
      %p187 = pneg %p107
      %p188 = scmp.lt.s32.totalorder %s16, 1
      %s189 = scalar_select %p188, %s16, 1
      %s190 = smul.addr %s189, 8
      %s191 = scalar_lea.vmem %s3, %s190
      %p192 = pneg %p136
      %p193 = pneg %p133
      %p194 = scmp.lt.s32.totalorder %s16, 1
      %s195 = scalar_select %p194, %s16, 1
      %s196 = smul.addr %s195, 8
      %s197 = scalar_lea.vmem %s4, %s196
      %p198 = scmp.lt.s32.totalorder %s16, 1
      %s199 = scalar_select %p198, %s16, 1
      %s200 = smul.addr %s199, 8
      %s201 = scalar_lea.vmem %s0, %s200
      %p202 = scmp.lt.s32.totalorder %s16, 1
      %s203 = scalar_select %p202, %s16, 1
      %s204 = smul.addr %s203, 8
      %s205 = scalar_lea.vmem %s2, %s204
      %p206 = scmp.lt.s32.totalorder %s16, 1
      %s207 = scalar_select %p206, %s16, 1
      %s208 = smul.addr %s207, 8
      %s209 = scalar_lea.vmem %s3, %s208
      %p210 = scmp.lt.s32.totalorder %s16, 1
      %s211 = scalar_select %p210, %s16, 1
      %s212 = smul.addr %s211, 8
      %s213 = scalar_lea.vmem %s4, %s212
      %v214 = vld [vmem:[%s201] sm:$0xff]
      %215 = vrot.lane.b32.xlu0 %v214, 1
      %v216 = vpop.permute.xlu0 %215
      %217 = vrot.lane.b32.xlu0 %v214, 127
      %v218 = vpop.permute.xlu0 %217
      %v219 = vld [vmem:[%s1] sm:$0xff]
      %s220 = scalar_lea.vmem %s1, 8
      %v221 = vld [vmem:[%s220] sm:$0xff]
      %vm222 = vcmask 64512
      %v224 = vsel %vm222, %v221, 0
      %226 = vmatprep.subr.mxu0 0.0
      %227 = vmatpush1.msra.mxu0 %v214
      %228 = vmatprep.subr.mxu0 0.0
      %229 = vmatpush1.msra.mxu0 0.0
      %230 = vmatprep.subr.mxu0 0.0
      %231 = vmatpush1.msra.mxu0 0.0
      %232 = vmatprep.subr.mxu0 0.0
      %233 = vmatpush1.msra.mxu0 0.0
      %234 = vmatprep.subr.mxu0 0.0
      %235 = vmatpush1.msra.mxu0 0.0
      %236 = vmatprep.subr.mxu0 0.0
      %237 = vmatpush1.msra.mxu0 0.0
      %238 = vmatprep.subr.mxu0 0.0
      %239 = vmatpush1.msra.mxu0 0.0
      %240 = vmatprep.subr.mxu0 0.0
      %241 = vmatpush1.msra.mxu0 0.0
      %242 = vmatprep.subr.mxu0 0.0
      %243 = vmatpush1.msra.mxu0 0.0
      %244 = vmatprep.subr.mxu0 0.0
      %245 = vmatpush1.msra.mxu0 0.0
      %246 = vmatprep.subr.mxu0 0.0
      %247 = vmatpush1.msra.mxu0 0.0
      %248 = vmatprep.subr.mxu0 0.0
      %249 = vmatpush1.msra.mxu0 0.0
      %250 = vmatprep.subr.mxu0 0.0
      %251 = vmatpush1.msra.mxu0 0.0
      %252 = vmatprep.subr.mxu0 0.0
      %253 = vmatpush1.msra.mxu0 0.0
      %254 = vmatprep.subr.mxu0 0.0
      %255 = vmatpush1.msra.mxu0 0.0
      %256 = vmatprep.subr.mxu0 0.0
      %257 = vmatpush1.msra.mxu0 0.0
      %258 = vmatprep.subr.mxu0 0.0
      %259 = vmatpush1.msra.mxu0 0.0
      %260 = vmatprep.subr.mxu0 0.0
      %261 = vmatpush1.msra.mxu0 0.0
      %262 = vmatprep.subr.mxu0 0.0
      %263 = vmatpush1.msra.mxu0 0.0
      %264 = vmatprep.subr.mxu0 0.0
      %265 = vmatpush1.msra.mxu0 0.0
      %266 = vmatprep.subr.mxu0 0.0
      %267 = vmatpush1.msra.mxu0 0.0
      %268 = vmatprep.subr.mxu0 0.0
      %269 = vmatpush1.msra.mxu0 0.0
      %270 = vmatprep.subr.mxu0 0.0
      %271 = vmatpush1.msra.mxu0 0.0
      %272 = vmatprep.subr.mxu0 0.0
      %273 = vmatpush1.msra.mxu0 0.0
      %274 = vmatprep.subr.mxu0 0.0
      %275 = vmatpush1.msra.mxu0 0.0
      %276 = vmatprep.subr.mxu0 0.0
      %277 = vmatpush1.msra.mxu0 0.0
      %278 = vmatprep.subr.mxu0 0.0
      %279 = vmatpush1.msra.mxu0 0.0
      %280 = vmatprep.subr.mxu0 0.0
      %281 = vmatpush1.msra.mxu0 0.0
      %282 = vmatprep.subr.mxu0 0.0
      %283 = vmatpush1.msra.mxu0 0.0
      %284 = vmatprep.subr.mxu0 0.0
      %285 = vmatpush1.msra.mxu0 0.0
      %286 = vmatprep.subr.mxu0 0.0
      %287 = vmatpush1.msra.mxu0 0.0
      %288 = vmatprep.subr.mxu0 0.0
      %289 = vmatpush1.msra.mxu0 0.0
      %290 = vmatprep.mubr.f32.mxu0 0.0
      %291 = vmatmul.mubr.f32.gmra.mrb[0].mxu0 %v224
      %v292 = vpop.f32.mrb[0].mxu0
      %v293 = vadd.f32 0.0, %v292
      %v294 = vpop.f32.mrb[0].mxu0
      %295 = vdwg.mxu0
      %v297 = vsel %vm222, %v219, 0
      %299 = vmatprep.subr.mxu0 0.0
      %300 = vmatpush1.msra.mxu0 %v216
      %301 = vmatprep.subr.mxu0 0.0
      %302 = vmatpush1.msra.mxu0 0.0
      %303 = vmatprep.subr.mxu0 0.0
      %304 = vmatpush1.msra.mxu0 0.0
      %305 = vmatprep.subr.mxu0 0.0
      %306 = vmatpush1.msra.mxu0 0.0
      %307 = vmatprep.subr.mxu0 0.0
      %308 = vmatpush1.msra.mxu0 0.0
      %309 = vmatprep.subr.mxu0 0.0
      %310 = vmatpush1.msra.mxu0 0.0
      %311 = vmatprep.subr.mxu0 0.0
      %312 = vmatpush1.msra.mxu0 0.0
      %313 = vmatprep.subr.mxu0 0.0
      %314 = vmatpush1.msra.mxu0 0.0
      %315 = vmatprep.subr.mxu0 0.0
      %316 = vmatpush1.msra.mxu0 0.0
      %317 = vmatprep.subr.mxu0 0.0
      %318 = vmatpush1.msra.mxu0 0.0
      %319 = vmatprep.subr.mxu0 0.0
      %320 = vmatpush1.msra.mxu0 0.0
      %321 = vmatprep.subr.mxu0 0.0
      %322 = vmatpush1.msra.mxu0 0.0
      %323 = vmatprep.subr.mxu0 0.0
      %324 = vmatpush1.msra.mxu0 0.0
      %325 = vmatprep.subr.mxu0 0.0
      %326 = vmatpush1.msra.mxu0 0.0
      %327 = vmatprep.subr.mxu0 0.0
      %328 = vmatpush1.msra.mxu0 0.0
      %329 = vmatprep.subr.mxu0 0.0
      %330 = vmatpush1.msra.mxu0 0.0
      %331 = vmatprep.subr.mxu0 0.0
      %332 = vmatpush1.msra.mxu0 0.0
      %333 = vmatprep.subr.mxu0 0.0
      %334 = vmatpush1.msra.mxu0 0.0
      %335 = vmatprep.subr.mxu0 0.0
      %336 = vmatpush1.msra.mxu0 0.0
      %337 = vmatprep.subr.mxu0 0.0
      %338 = vmatpush1.msra.mxu0 0.0
      %339 = vmatprep.subr.mxu0 0.0
      %340 = vmatpush1.msra.mxu0 0.0
      %341 = vmatprep.subr.mxu0 0.0
      %342 = vmatpush1.msra.mxu0 0.0
      %343 = vmatprep.subr.mxu0 0.0
      %344 = vmatpush1.msra.mxu0 0.0
      %345 = vmatprep.subr.mxu0 0.0
      %346 = vmatpush1.msra.mxu0 0.0
      %347 = vmatprep.subr.mxu0 0.0
      %348 = vmatpush1.msra.mxu0 0.0
      %349 = vmatprep.subr.mxu0 0.0
      %350 = vmatpush1.msra.mxu0 0.0
      %351 = vmatprep.subr.mxu0 0.0
      %352 = vmatpush1.msra.mxu0 0.0
      %353 = vmatprep.subr.mxu0 0.0
      %354 = vmatpush1.msra.mxu0 0.0
      %355 = vmatprep.subr.mxu0 0.0
      %356 = vmatpush1.msra.mxu0 0.0
      %357 = vmatprep.subr.mxu0 0.0
      %358 = vmatpush1.msra.mxu0 0.0
      %359 = vmatprep.subr.mxu0 0.0
      %360 = vmatpush1.msra.mxu0 0.0
      %361 = vmatprep.subr.mxu0 0.0
      %362 = vmatpush1.msra.mxu0 0.0
      %363 = vmatprep.mubr.f32.mxu0 0.0
      %364 = vmatmul.mubr.f32.gmra.mrb[0].mxu0 %v297
      %v365 = vpop.f32.mrb[0].mxu0
      %v366 = vadd.f32 %v293, %v365
      %v367 = vpop.f32.mrb[0].mxu0
      %368 = vdwg.mxu0
      %s369 = scalar_lea.vmem %s1, 16
      %v370 = vld [vmem:[%s369] sm:$0xff]
      %v372 = vsel %vm222, %v370, 0
      %374 = vmatprep.subr.mxu0 0.0
      %375 = vmatpush1.msra.mxu0 %v218
      %376 = vmatprep.subr.mxu0 0.0
      %377 = vmatpush1.msra.mxu0 0.0
      %378 = vmatprep.subr.mxu0 0.0
      %379 = vmatpush1.msra.mxu0 0.0
      %380 = vmatprep.subr.mxu0 0.0
      %381 = vmatpush1.msra.mxu0 0.0
      %382 = vmatprep.subr.mxu0 0.0
      %383 = vmatpush1.msra.mxu0 0.0
      %384 = vmatprep.subr.mxu0 0.0
      %385 = vmatpush1.msra.mxu0 0.0
      %386 = vmatprep.subr.mxu0 0.0
      %387 = vmatpush1.msra.mxu0 0.0
      %388 = vmatprep.subr.mxu0 0.0
      %389 = vmatpush1.msra.mxu0 0.0
      %390 = vmatprep.subr.mxu0 0.0
      %391 = vmatpush1.msra.mxu0 0.0
      %392 = vmatprep.subr.mxu0 0.0
      %393 = vmatpush1.msra.mxu0 0.0
      %394 = vmatprep.subr.mxu0 0.0
      %395 = vmatpush1.msra.mxu0 0.0
      %396 = vmatprep.subr.mxu0 0.0
      %397 = vmatpush1.msra.mxu0 0.0
      %398 = vmatprep.subr.mxu0 0.0
      %399 = vmatpush1.msra.mxu0 0.0
      %400 = vmatprep.subr.mxu0 0.0
      %401 = vmatpush1.msra.mxu0 0.0
      %402 = vmatprep.subr.mxu0 0.0
      %403 = vmatpush1.msra.mxu0 0.0
      %404 = vmatprep.subr.mxu0 0.0
      %405 = vmatpush1.msra.mxu0 0.0
      %406 = vmatprep.subr.mxu0 0.0
      %407 = vmatpush1.msra.mxu0 0.0
      %408 = vmatprep.subr.mxu0 0.0
      %409 = vmatpush1.msra.mxu0 0.0
      %410 = vmatprep.subr.mxu0 0.0
      %411 = vmatpush1.msra.mxu0 0.0
      %412 = vmatprep.subr.mxu0 0.0
      %413 = vmatpush1.msra.mxu0 0.0
      %414 = vmatprep.subr.mxu0 0.0
      %415 = vmatpush1.msra.mxu0 0.0
      %416 = vmatprep.subr.mxu0 0.0
      %417 = vmatpush1.msra.mxu0 0.0
      %418 = vmatprep.subr.mxu0 0.0
      %419 = vmatpush1.msra.mxu0 0.0
      %420 = vmatprep.subr.mxu0 0.0
      %421 = vmatpush1.msra.mxu0 0.0
      %422 = vmatprep.subr.mxu0 0.0
      %423 = vmatpush1.msra.mxu0 0.0
      %424 = vmatprep.subr.mxu0 0.0
      %425 = vmatpush1.msra.mxu0 0.0
      %426 = vmatprep.subr.mxu0 0.0
      %427 = vmatpush1.msra.mxu0 0.0
      %428 = vmatprep.subr.mxu0 0.0
      %429 = vmatpush1.msra.mxu0 0.0
      %430 = vmatprep.subr.mxu0 0.0
      %431 = vmatpush1.msra.mxu0 0.0
      %432 = vmatprep.subr.mxu0 0.0
      %433 = vmatpush1.msra.mxu0 0.0
      %434 = vmatprep.subr.mxu0 0.0
      %435 = vmatpush1.msra.mxu0 0.0
      %436 = vmatprep.subr.mxu0 0.0
      %437 = vmatpush1.msra.mxu0 0.0
      %438 = vmatprep.mubr.f32.mxu0 0.0
      %439 = vmatmul.mubr.f32.gmra.mrb[0].mxu0 %v372
      %v440 = vpop.f32.mrb[0].mxu0
      %v441 = vadd.f32 0.0, %v440
      %v442 = vpop.f32.mrb[0].mxu0
      %443 = vdwg.mxu0
      %v444 = vadd.f32 %v366, %v441
      %v445 = vlaneseq
      %v446 = vand.u32 %v445, 127
      %vm447 = vcmp.lt.s32.totalorder %v446, 16
      %v448 = vsel %vm447, 1, 0
      %v449 = vcvt.s32.f32 %v448
      %v450 = vmul.f32 %v444, %v449
      %451 = vadd.xlane.f32.xlu0 %v450
      %v452 = vpop.xlane.xlu0 %451
      %vm453 = vcmask 7168
      %454 = vst.msk [vmem:[%s209] sm:$0xff] %vm453, %v452
      %v455 = vmul.f32 %v450, %v444
      %456 = vadd.xlane.f32.xlu0 %v455
      %v457 = vpop.xlane.xlu0 %456
      %458 = vst.msk [vmem:[%s213] sm:$0xff] %vm453, %v457
      %459 = vst [vmem:[%s205] sm:$0xff] %v444
      %p460 = scmp.lt.s32.totalorder %s16, 1
      %s461 = scalar_select %p460, %s16, 1
      %s462 = smul.addr %s461, 8
      %s463 = scalar_lea.vmem %s2, %s462
      %p464 = scmp.lt.s32.totalorder %s16, 1
      %s465 = scalar_select %p464, %s16, 1
      %s466 = smul.addr %s465, 8
      %s467 = scalar_lea.vmem %s3, %s466
      %p468 = scmp.lt.s32.totalorder %s16, 1
      %s469 = scalar_select %p468, %s16, 1
      %s470 = smul.addr %s469, 8
      %s471 = scalar_lea.vmem %s4, %s470
      // Predicated region
      $region29: #{residual_block.3} parent=27 // pred_check
        %p472 = pneg %p81
      $region30: #{residual_block.3} parent=27 // pred_check_branch
        %474 = sbr.rel (%p472) target = $region32
      $region31: #{residual_block.3} parent=27 // pred_region
        _
      $region32: #{residual_block.3} parent=27 // pred_fallthru
        _
      // Predicated region
      $region33: #{residual_block.3} parent=27 // pred_check
        %p475 = pneg %p107
      $region34: #{residual_block.3} parent=27 // pred_check_branch
        %477 = sbr.rel (%p475) target = $region36
      $region35: #{residual_block.3} parent=27 // pred_region
        _
      $region36: #{residual_block.3} parent=27 // pred_fallthru
        _
      // Predicated region
      $region37: #{residual_block.3} parent=27 // pred_check
        %p478 = pneg %p133
      $region38: #{residual_block.3} parent=27 // pred_check_branch
        %480 = sbr.rel (%p478) target = $region40
      $region39: #{residual_block.3} parent=27 // pred_region
        _
      $region40: #{residual_block.3} parent=27 // pred_fallthru
        _
    $region28: #{residual_block.3} parent=5 // pred_fallthru
      _
    %p481 = scmp.le.s32.totalorder 2, %s11
    // Predicated region
    $region41: #{residual_block.3} parent=5 // pred_check
      %p482 = pneg %p481
    $region42: #{residual_block.3} parent=5 // pred_check_branch
      %484 = sbr.rel (%p482) target = $region44
    $region43: #{residual_block.3} parent=5 // pred_region
      %s485 = ssub.s32 %s11, 2
      // Predicated region
      $region45: #{residual_block.3} parent=43 // pred_check
        %p486 = pneg %p87
      $region46: #{residual_block.3} parent=43 // pred_check_branch
        %488 = sbr.rel (%p486) target = $region48
      $region47: #{residual_block.3} parent=43 // pred_region
        %p489 = scmp.lt.s32.totalorder %s17, 1
        %s490 = scalar_select %p489, %s17, 1
        %s491 = smul.addr %s490, 8
        %s492 = scalar_lea.vmem %s2, %s491
      $region48: #{residual_block.3} parent=43 // pred_fallthru
        _
      // Predicated region
      $region49: #{residual_block.3} parent=43 // pred_check
        %p493 = pneg %p113
      $region50: #{residual_block.3} parent=43 // pred_check_branch
        %495 = sbr.rel (%p493) target = $region52
      $region51: #{residual_block.3} parent=43 // pred_region
        %p496 = scmp.lt.s32.totalorder %s17, 1
        %s497 = scalar_select %p496, %s17, 1
        %s498 = smul.addr %s497, 8
        %s499 = scalar_lea.vmem %s3, %s498
      $region52: #{residual_block.3} parent=43 // pred_fallthru
        _
      // Predicated region
      $region53: #{residual_block.3} parent=43 // pred_check
        %p500 = pneg %p139
      $region54: #{residual_block.3} parent=43 // pred_check_branch
        %502 = sbr.rel (%p500) target = $region56
      $region55: #{residual_block.3} parent=43 // pred_region
        %p503 = scmp.lt.s32.totalorder %s17, 1
        %s504 = scalar_select %p503, %s17, 1
        %s505 = smul.addr %s504, 8
        %s506 = scalar_lea.vmem %s4, %s505
      $region56: #{residual_block.3} parent=43 // pred_fallthru
        _
    $region44: #{residual_block.3} parent=5 // pred_fallthru
      _
  $region6: #{residual_block.3} parent=0 // loop_footer
    %s15 = sadd.s32 1, %s11
  $region7: #{residual_block.3} parent=0 // loop_footer_branch
    %10 = sbr.rel target = $region3
  $region8: #{residual_block.3} parent=0 // loop_exit
    _

// kernel: residual_block.4
$region0: #{residual_block.4}
  #allocation0 [shape = 'u32[]', space=smem, size = 0x4, offset = 0x4, fixed_abs, tag = 'smem constant byte address 0x4 - core index']
  #allocation1 [shape = 'u32[144,128]{1,0:T(1,128)}', space=vmem, size = 0x12000, scoped, tag = 'internal scratch']
  %s0 = inlined_call_operand.vmem [shape: f32[2,8,128], index: 0, kind: input, shape index: {}]
  %s1 = inlined_call_operand.vmem [shape: f32[8,1], index: 1, kind: input, shape index: {}]
  %s2 = inlined_call_operand.vmem [shape: f32[8,1], index: 2, kind: input, shape index: {}]
  %s3 = inlined_call_operand.vmem [shape: f32[3,8,8], index: 3, kind: input, shape index: {}]
  %s4 = inlined_call_operand.vmem [shape: f32[2,8,128], index: 4, kind: output, shape index: {0}]
  %s5 = inlined_call_operand.vmem [shape: f32[2,8,1], index: 5, kind: output, shape index: {1}]
  %s6 = inlined_call_operand.vmem [shape: f32[2,8,1], index: 6, kind: output, shape index: {2}]
  %7 = xla_tuple %s4, %s5, %s6
  %s8 = sld [smem:[#allocation0]]
  $region65: #{residual_block.4} parent=0
    _
  %s10 = ssub.s32 1, %s8
  %s11 = scalar_select 0, %s10, %s8
  loop: start=0, step=1, limit=4
  $region2: #{residual_block.4} parent=0 // loop_pre_header
    _
  $region3: #{residual_block.4} parent=0 // loop_header
    %s13 = sphi 0, %s17
    %p14 = scmp.ge.s32.totalorder %s13, 4
    %s23 = sphi 0, %s25
    %s26 = sphi 0, %s23
    %s27 = sphi 0, %s26
    %s43 = sphi 0, %s27
    %s47 = sphi 0, %s47
    %s49 = sphi 0, %s47
    %s50 = sphi 0, %s49
    %s64 = sphi 0, %s50
    %s68 = sphi 0, %s68
    %s70 = sphi 0, %s68
    %s71 = sphi 0, %s70
    %s85 = sphi 0, %s71
    %s89 = sphi 0, %s89
    %s91 = sphi 0, %s89
    %s92 = sphi 0, %s91
    %s106 = sphi 0, %s92
    %s112 = sphi 0, %s114
    %s115 = sphi 0, %s112
    %s116 = sphi 0, %s115
    %s132 = sphi 0, %s116
    %s138 = sphi 0, %s140
    %s141 = sphi 0, %s138
    %s142 = sphi 0, %s141
    %s158 = sphi 0, %s142
    %s164 = sphi 0, %s166
    %s167 = sphi 0, %s164
    %s168 = sphi 0, %s167
    %s184 = sphi 0, %s168
  $region4: #{residual_block.4} parent=0 // loop_header_branch
    %16 = sbr.rel (%p14) target = $region8
  $region5: #{residual_block.4} parent=0 // loop_body
    %s18 = ssub.s32 %s13, 1
    %s19 = ssub.s32 %s13, 2
    %s20 = sadd.s32 %s13, 1
    %s21 = ssub.s32 %s13, %s20
    %p22 = scmp.eq.s32.totalorder %s21, 0
    %s24 = sadd.s32 %s23, 1
    %s25 = scalar_select %p22, %s23, %s24
    %p28 = pneg %p22
    %p29 = scmp.eq.s32.totalorder %s13, 1
    %p30 = por %p28, %p29
    %p31 = scmp.ne.s32.totalorder %s23, %s26
    %p32 = scmp.eq.s32.totalorder %s13, 0
    %p33 = por %p31, %p32
    %p34 = scmp.ne.s32.totalorder %s23, %s26
    %p35 = scmp.eq.s32.totalorder %s18, 1
    %p36 = por %p34, %p35
    %p37 = scmp.ne.s32.totalorder %s26, %s27
    %p38 = scmp.eq.s32.totalorder %s18, 0
    %p39 = por %p37, %p38
    %p40 = scmp.ne.s32.totalorder %s26, %s27
    %p41 = scmp.eq.s32.totalorder %s19, 1
    %p42 = por %p40, %p41
    %p44 = scmp.ne.s32.totalorder %s27, %s43
    %p45 = scmp.eq.s32.totalorder %s19, 0
    %p46 = por %p44, %p45
    %s48 = sadd.s32 %s47, 1
    %p51 = scmp.eq.s32.totalorder %s13, 1
    %p52 = scmp.ne.s32.totalorder %s47, %s49
    %p53 = scmp.eq.s32.totalorder %s13, 0
    %p54 = por %p52, %p53
    %p55 = scmp.ne.s32.totalorder %s47, %s49
    %p56 = scmp.eq.s32.totalorder %s18, 1
    %p57 = por %p55, %p56
    %p58 = scmp.ne.s32.totalorder %s49, %s50
    %p59 = scmp.eq.s32.totalorder %s18, 0
    %p60 = por %p58, %p59
    %p61 = scmp.ne.s32.totalorder %s49, %s50
    %p62 = scmp.eq.s32.totalorder %s19, 1
    %p63 = por %p61, %p62
    %p65 = scmp.ne.s32.totalorder %s50, %s64
    %p66 = scmp.eq.s32.totalorder %s19, 0
    %p67 = por %p65, %p66
    %s69 = sadd.s32 %s68, 1
    %p72 = scmp.eq.s32.totalorder %s13, 1
    %p73 = scmp.ne.s32.totalorder %s68, %s70
    %p74 = scmp.eq.s32.totalorder %s13, 0
    %p75 = por %p73, %p74
    %p76 = scmp.ne.s32.totalorder %s68, %s70
    %p77 = scmp.eq.s32.totalorder %s18, 1
    %p78 = por %p76, %p77
    %p79 = scmp.ne.s32.totalorder %s70, %s71
    %p80 = scmp.eq.s32.totalorder %s18, 0
    %p81 = por %p79, %p80
    %p82 = scmp.ne.s32.totalorder %s70, %s71
    %p83 = scmp.eq.s32.totalorder %s19, 1
    %p84 = por %p82, %p83
    %p86 = scmp.ne.s32.totalorder %s71, %s85
    %p87 = scmp.eq.s32.totalorder %s19, 0
    %p88 = por %p86, %p87
    %s90 = sadd.s32 %s89, 1
    %p93 = scmp.eq.s32.totalorder %s13, 1
    %p94 = scmp.ne.s32.totalorder %s89, %s91
    %p95 = scmp.eq.s32.totalorder %s13, 0
    %p96 = por %p94, %p95
    %p97 = scmp.ne.s32.totalorder %s89, %s91
    %p98 = scmp.eq.s32.totalorder %s18, 1
    %p99 = por %p97, %p98
    %p100 = scmp.ne.s32.totalorder %s91, %s92
    %p101 = scmp.eq.s32.totalorder %s18, 0
    %p102 = por %p100, %p101
    %p103 = scmp.ne.s32.totalorder %s91, %s92
    %p104 = scmp.eq.s32.totalorder %s19, 1
    %p105 = por %p103, %p104
    %p107 = scmp.ne.s32.totalorder %s92, %s106
    %p108 = scmp.eq.s32.totalorder %s19, 0
    %p109 = por %p107, %p108
    %s110 = ssub.s32 %s13, %s20
    %p111 = scmp.eq.s32.totalorder %s110, 0
    %s113 = sadd.s32 %s112, 1
    %s114 = scalar_select %p111, %s112, %s113
    %p117 = pneg %p111
    %p118 = scmp.eq.s32.totalorder %s13, 1
    %p119 = por %p117, %p118
    %p120 = scmp.ne.s32.totalorder %s112, %s115
    %p121 = scmp.eq.s32.totalorder %s13, 0
    %p122 = por %p120, %p121
    %p123 = scmp.ne.s32.totalorder %s112, %s115
    %p124 = scmp.eq.s32.totalorder %s18, 1
    %p125 = por %p123, %p124
    %p126 = scmp.ne.s32.totalorder %s115, %s116
    %p127 = scmp.eq.s32.totalorder %s18, 0
    %p128 = por %p126, %p127
    %p129 = scmp.ne.s32.totalorder %s115, %s116
    %p130 = scmp.eq.s32.totalorder %s19, 1
    %p131 = por %p129, %p130
    %p133 = scmp.ne.s32.totalorder %s116, %s132
    %p134 = scmp.eq.s32.totalorder %s19, 0
    %p135 = por %p133, %p134
    %s136 = ssub.s32 %s13, %s20
    %p137 = scmp.eq.s32.totalorder %s136, 0
    %s139 = sadd.s32 %s138, 1
    %s140 = scalar_select %p137, %s138, %s139
    %p143 = pneg %p137
    %p144 = scmp.eq.s32.totalorder %s13, 1
    %p145 = por %p143, %p144
    %p146 = scmp.ne.s32.totalorder %s138, %s141
    %p147 = scmp.eq.s32.totalorder %s13, 0
    %p148 = por %p146, %p147
    %p149 = scmp.ne.s32.totalorder %s138, %s141
    %p150 = scmp.eq.s32.totalorder %s18, 1
    %p151 = por %p149, %p150
    %p152 = scmp.ne.s32.totalorder %s141, %s142
    %p153 = scmp.eq.s32.totalorder %s18, 0
    %p154 = por %p152, %p153
    %p155 = scmp.ne.s32.totalorder %s141, %s142
    %p156 = scmp.eq.s32.totalorder %s19, 1
    %p157 = por %p155, %p156
    %p159 = scmp.ne.s32.totalorder %s142, %s158
    %p160 = scmp.eq.s32.totalorder %s19, 0
    %p161 = por %p159, %p160
    %s162 = ssub.s32 %s13, %s20
    %p163 = scmp.eq.s32.totalorder %s162, 0
    %s165 = sadd.s32 %s164, 1
    %s166 = scalar_select %p163, %s164, %s165
    %p169 = pneg %p163
    %p170 = scmp.eq.s32.totalorder %s13, 1
    %p171 = por %p169, %p170
    %p172 = scmp.ne.s32.totalorder %s164, %s167
    %p173 = scmp.eq.s32.totalorder %s13, 0
    %p174 = por %p172, %p173
    %p175 = scmp.ne.s32.totalorder %s164, %s167
    %p176 = scmp.eq.s32.totalorder %s18, 1
    %p177 = por %p175, %p176
    %p178 = scmp.ne.s32.totalorder %s167, %s168
    %p179 = scmp.eq.s32.totalorder %s18, 0
    %p180 = por %p178, %p179
    %p181 = scmp.ne.s32.totalorder %s167, %s168
    %p182 = scmp.eq.s32.totalorder %s19, 1
    %p183 = por %p181, %p182
    %p185 = scmp.ne.s32.totalorder %s168, %s184
    %p186 = scmp.eq.s32.totalorder %s19, 0
    %p187 = por %p185, %p186
    %p188 = scmp.le.s32.totalorder 1, %s13
    %p189 = scmp.lt.s32.totalorder %s13, 3
    %p190 = pnand %p188, %p189
    %p191 = pneg %p190
    // Predicated region
    $region9: #{residual_block.4} parent=5 // pred_check
      _
    $region10: #{residual_block.4} parent=5 // pred_check_branch
      %193 = sbr.rel (%p190) target = $region12
    $region11: #{residual_block.4} parent=5 // pred_region
      %s194 = ssub.s32 %s13, 1
      // Predicated region
      $region13: #{residual_block.4} parent=11 // pred_check
        %p195 = pneg %p60
      $region14: #{residual_block.4} parent=11 // pred_check_branch
        %197 = sbr.rel (%p195) target = $region16
      $region15: #{residual_block.4} parent=11 // pred_region
        _
      $region16: #{residual_block.4} parent=11 // pred_fallthru
        _
      // Predicated region
      $region17: #{residual_block.4} parent=11 // pred_check
        %p198 = pneg %p81
      $region18: #{residual_block.4} parent=11 // pred_check_branch
        %200 = sbr.rel (%p198) target = $region20
      $region19: #{residual_block.4} parent=11 // pred_region
        _
      $region20: #{residual_block.4} parent=11 // pred_fallthru
        _
      // Predicated region
      $region21: #{residual_block.4} parent=11 // pred_check
        %p201 = pneg %p102
      $region22: #{residual_block.4} parent=11 // pred_check_branch
        %203 = sbr.rel (%p201) target = $region24
      $region23: #{residual_block.4} parent=11 // pred_region
        _
      $region24: #{residual_block.4} parent=11 // pred_fallthru
        _
    $region12: #{residual_block.4} parent=5 // pred_fallthru
      _
    %p204 = scmp.lt.s32.totalorder %s13, 2
    // Predicated region
    $region25: #{residual_block.4} parent=5 // pred_check
      %p205 = pneg %p204
    $region26: #{residual_block.4} parent=5 // pred_check_branch
      %207 = sbr.rel (%p205) target = $region28
    $region27: #{residual_block.4} parent=5 // pred_region
      // Predicated region
      $region29: #{residual_block.4} parent=27 // pred_check
        %p208 = pneg %p33
      $region30: #{residual_block.4} parent=27 // pred_check_branch
        %210 = sbr.rel (%p208) target = $region32
      $region31: #{residual_block.4} parent=27 // pred_region
        %p211 = scmp.lt.s32.totalorder %s13, 1
        %s212 = scalar_select %p211, %s13, 1
        %s213 = smul.addr %s212, 8
        %s214 = scalar_lea.vmem %s0, %s213
      $region32: #{residual_block.4} parent=27 // pred_fallthru
        _
    $region28: #{residual_block.4} parent=5 // pred_fallthru
      _
    %p215 = scmp.le.s32.totalorder 1, %s13
    %p216 = scmp.lt.s32.totalorder %s13, 3
    %p217 = pnand %p215, %p216
    %p218 = pneg %p217
    // Predicated region
    $region33: #{residual_block.4} parent=5 // pred_check
      _
    $region34: #{residual_block.4} parent=5 // pred_check_branch
      %220 = sbr.rel (%p217) target = $region36
    $region35: #{residual_block.4} parent=5 // pred_region
      %s221 = ssub.s32 %s13, 1
      %p222 = scmp.lt.s32.totalorder %s18, 1
      %s223 = scalar_select %p222, %s18, 1
      %s224 = smul.addr %s223, 8
      %s225 = scalar_lea.vmem %s0, %s224
      %p226 = pneg %p39
      %p227 = pneg %p36
      %p228 = pneg %p60
      %p229 = pneg %p57
      %p230 = pneg %p81
      %p231 = pneg %p78
      %p232 = pneg %p102
      %p233 = pneg %p99
      %p234 = pneg %p128
      %p235 = pneg %p125
      %p236 = scmp.lt.s32.totalorder %s18, 1
      %s237 = scalar_select %p236, %s18, 1
      %s238 = smul.addr %s237, 8
      %s239 = scalar_lea.vmem %s4, %s238
      %p240 = pneg %p154
      %p241 = pneg %p151
      %p242 = scmp.lt.s32.totalorder %s18, 1
      %s243 = scalar_select %p242, %s18, 1
      %s244 = smul.addr %s243, 8
      %s245 = scalar_lea.vmem %s5, %s244
      %p246 = pneg %p180
      %p247 = pneg %p177
      %p248 = scmp.lt.s32.totalorder %s18, 1
      %s249 = scalar_select %p248, %s18, 1
      %s250 = smul.addr %s249, 8
      %s251 = scalar_lea.vmem %s6, %s250
      %p252 = scmp.lt.s32.totalorder %s18, 1
      %s253 = scalar_select %p252, %s18, 1
      %s254 = smul.addr %s253, 8
      %s255 = scalar_lea.vmem %s0, %s254
      %p256 = scmp.lt.s32.totalorder %s18, 1
      %s257 = scalar_select %p256, %s18, 1
      %s258 = smul.addr %s257, 8
      %s259 = scalar_lea.vmem %s4, %s258
      %p260 = scmp.lt.s32.totalorder %s18, 1
      %s261 = scalar_select %p260, %s18, 1
      %s262 = smul.addr %s261, 8
      %s263 = scalar_lea.vmem %s5, %s262
      %p264 = scmp.lt.s32.totalorder %s18, 1
      %s265 = scalar_select %p264, %s18, 1
      %s266 = smul.addr %s265, 8
      %s267 = scalar_lea.vmem %s6, %s266
      %v268 = vlaneseq
      %v269 = vand.u32 %v268, 127
      %vm270 = vcmp.lt.s32.totalorder %v269, 16
      %v271 = vsel %vm270, 1, 0
      %v272 = vcvt.s32.f32 %v271
      %v273 = vld [vmem:[%s255] sm:$0xff]
      %v274 = vld [vmem:[%s1] sm:$0xff]
      %276 = vset.pattern.permute.xlu0 0
      %277 = vperm.xlu0 %276, %v274
      %v278 = vpop.permute.xlu0 %277
      %v280 = vmul.f32 %v273, %v278
      %v281 = vld [vmem:[%s2] sm:$0xff]
      %283 = vset.pattern.permute.xlu0 0
      %284 = vperm.xlu0 %283, %v281
      %v285 = vpop.permute.xlu0 %284
      %v287 = vadd.f32 %v280, %v285
      %v288 = vmax.f32 %v287, 0.0
      %v289 = vmul.f32 %v288, %v272
      %290 = vrot.lane.b32.xlu0 %v289, 1
      %v291 = vpop.permute.xlu0 %290
      %292 = vrot.lane.b32.xlu0 %v289, 127
      %v293 = vpop.permute.xlu0 %292
      %v294 = vld [vmem:[%s3] sm:$0xff]
      %s295 = scalar_lea.vmem %s3, 8
      %v296 = vld [vmem:[%s295] sm:$0xff]
      %vm297 = vcmask 64512
      %v299 = vsel %vm297, %v296, 0
      %301 = vmatprep.subr.mxu0 0.0
      %302 = vmatpush1.msra.mxu0 %v289
      %303 = vmatprep.subr.mxu0 0.0
      %304 = vmatpush1.msra.mxu0 0.0
      %305 = vmatprep.subr.mxu0 0.0
      %306 = vmatpush1.msra.mxu0 0.0
      %307 = vmatprep.subr.mxu0 0.0
      %308 = vmatpush1.msra.mxu0 0.0
      %309 = vmatprep.subr.mxu0 0.0
      %310 = vmatpush1.msra.mxu0 0.0
      %311 = vmatprep.subr.mxu0 0.0
      %312 = vmatpush1.msra.mxu0 0.0
      %313 = vmatprep.subr.mxu0 0.0
      %314 = vmatpush1.msra.mxu0 0.0
      %315 = vmatprep.subr.mxu0 0.0
      %316 = vmatpush1.msra.mxu0 0.0
      %317 = vmatprep.subr.mxu0 0.0
      %318 = vmatpush1.msra.mxu0 0.0
      %319 = vmatprep.subr.mxu0 0.0
      %320 = vmatpush1.msra.mxu0 0.0
      %321 = vmatprep.subr.mxu0 0.0
      %322 = vmatpush1.msra.mxu0 0.0
      %323 = vmatprep.subr.mxu0 0.0
      %324 = vmatpush1.msra.mxu0 0.0
      %325 = vmatprep.subr.mxu0 0.0
      %326 = vmatpush1.msra.mxu0 0.0
      %327 = vmatprep.subr.mxu0 0.0
      %328 = vmatpush1.msra.mxu0 0.0
      %329 = vmatprep.subr.mxu0 0.0
      %330 = vmatpush1.msra.mxu0 0.0
      %331 = vmatprep.subr.mxu0 0.0
      %332 = vmatpush1.msra.mxu0 0.0
      %333 = vmatprep.subr.mxu0 0.0
      %334 = vmatpush1.msra.mxu0 0.0
      %335 = vmatprep.subr.mxu0 0.0
      %336 = vmatpush1.msra.mxu0 0.0
      %337 = vmatprep.subr.mxu0 0.0
      %338 = vmatpush1.msra.mxu0 0.0
      %339 = vmatprep.subr.mxu0 0.0
      %340 = vmatpush1.msra.mxu0 0.0
      %341 = vmatprep.subr.mxu0 0.0
      %342 = vmatpush1.msra.mxu0 0.0
      %343 = vmatprep.subr.mxu0 0.0
      %344 = vmatpush1.msra.mxu0 0.0
      %345 = vmatprep.subr.mxu0 0.0
      %346 = vmatpush1.msra.mxu0 0.0
      %347 = vmatprep.subr.mxu0 0.0
      %348 = vmatpush1.msra.mxu0 0.0
      %349 = vmatprep.subr.mxu0 0.0
      %350 = vmatpush1.msra.mxu0 0.0
      %351 = vmatprep.subr.mxu0 0.0
      %352 = vmatpush1.msra.mxu0 0.0
      %353 = vmatprep.subr.mxu0 0.0
      %354 = vmatpush1.msra.mxu0 0.0
      %355 = vmatprep.subr.mxu0 0.0
      %356 = vmatpush1.msra.mxu0 0.0
      %357 = vmatprep.subr.mxu0 0.0
      %358 = vmatpush1.msra.mxu0 0.0
      %359 = vmatprep.subr.mxu0 0.0
      %360 = vmatpush1.msra.mxu0 0.0
      %361 = vmatprep.subr.mxu0 0.0
      %362 = vmatpush1.msra.mxu0 0.0
      %363 = vmatprep.subr.mxu0 0.0
      %364 = vmatpush1.msra.mxu0 0.0
      %365 = vmatprep.mubr.f32.mxu0 0.0
      %366 = vmatmul.mubr.f32.gmra.mrb[0].mxu0 %v299
      %v367 = vpop.f32.mrb[0].mxu0
      %v368 = vadd.f32 0.0, %v367
      %v369 = vpop.f32.mrb[0].mxu0
      %370 = vdwg.mxu0
      %v372 = vsel %vm297, %v294, 0
      %374 = vmatprep.subr.mxu0 0.0
      %375 = vmatpush1.msra.mxu0 %v291
      %376 = vmatprep.subr.mxu0 0.0
      %377 = vmatpush1.msra.mxu0 0.0
      %378 = vmatprep.subr.mxu0 0.0
      %379 = vmatpush1.msra.mxu0 0.0
      %380 = vmatprep.subr.mxu0 0.0
      %381 = vmatpush1.msra.mxu0 0.0
      %382 = vmatprep.subr.mxu0 0.0
      %383 = vmatpush1.msra.mxu0 0.0
      %384 = vmatprep.subr.mxu0 0.0
      %385 = vmatpush1.msra.mxu0 0.0
      %386 = vmatprep.subr.mxu0 0.0
      %387 = vmatpush1.msra.mxu0 0.0
      %388 = vmatprep.subr.mxu0 0.0
      %389 = vmatpush1.msra.mxu0 0.0
      %390 = vmatprep.subr.mxu0 0.0
      %391 = vmatpush1.msra.mxu0 0.0
      %392 = vmatprep.subr.mxu0 0.0
      %393 = vmatpush1.msra.mxu0 0.0
      %394 = vmatprep.subr.mxu0 0.0
      %395 = vmatpush1.msra.mxu0 0.0
      %396 = vmatprep.subr.mxu0 0.0
      %397 = vmatpush1.msra.mxu0 0.0
      %398 = vmatprep.subr.mxu0 0.0
      %399 = vmatpush1.msra.mxu0 0.0
      %400 = vmatprep.subr.mxu0 0.0
      %401 = vmatpush1.msra.mxu0 0.0
      %402 = vmatprep.subr.mxu0 0.0
      %403 = vmatpush1.msra.mxu0 0.0
      %404 = vmatprep.subr.mxu0 0.0
      %405 = vmatpush1.msra.mxu0 0.0
      %406 = vmatprep.subr.mxu0 0.0
      %407 = vmatpush1.msra.mxu0 0.0
      %408 = vmatprep.subr.mxu0 0.0
      %409 = vmatpush1.msra.mxu0 0.0
      %410 = vmatprep.subr.mxu0 0.0
      %411 = vmatpush1.msra.mxu0 0.0
      %412 = vmatprep.subr.mxu0 0.0
      %413 = vmatpush1.msra.mxu0 0.0
      %414 = vmatprep.subr.mxu0 0.0
      %415 = vmatpush1.msra.mxu0 0.0
      %416 = vmatprep.subr.mxu0 0.0
      %417 = vmatpush1.msra.mxu0 0.0
      %418 = vmatprep.subr.mxu0 0.0
      %419 = vmatpush1.msra.mxu0 0.0
      %420 = vmatprep.subr.mxu0 0.0
      %421 = vmatpush1.msra.mxu0 0.0
      %422 = vmatprep.subr.mxu0 0.0
      %423 = vmatpush1.msra.mxu0 0.0
      %424 = vmatprep.subr.mxu0 0.0
      %425 = vmatpush1.msra.mxu0 0.0
      %426 = vmatprep.subr.mxu0 0.0
      %427 = vmatpush1.msra.mxu0 0.0
      %428 = vmatprep.subr.mxu0 0.0
      %429 = vmatpush1.msra.mxu0 0.0
      %430 = vmatprep.subr.mxu0 0.0
      %431 = vmatpush1.msra.mxu0 0.0
      %432 = vmatprep.subr.mxu0 0.0
      %433 = vmatpush1.msra.mxu0 0.0
      %434 = vmatprep.subr.mxu0 0.0
      %435 = vmatpush1.msra.mxu0 0.0
      %436 = vmatprep.subr.mxu0 0.0
      %437 = vmatpush1.msra.mxu0 0.0
      %438 = vmatprep.mubr.f32.mxu0 0.0
      %439 = vmatmul.mubr.f32.gmra.mrb[0].mxu0 %v372
      %v440 = vpop.f32.mrb[0].mxu0
      %v441 = vadd.f32 %v368, %v440
      %v442 = vpop.f32.mrb[0].mxu0
      %443 = vdwg.mxu0
      %s444 = scalar_lea.vmem %s3, 16
      %v445 = vld [vmem:[%s444] sm:$0xff]
      %v447 = vsel %vm297, %v445, 0
      %449 = vmatprep.subr.mxu0 0.0
      %450 = vmatpush1.msra.mxu0 %v293
      %451 = vmatprep.subr.mxu0 0.0
      %452 = vmatpush1.msra.mxu0 0.0
      %453 = vmatprep.subr.mxu0 0.0
      %454 = vmatpush1.msra.mxu0 0.0
      %455 = vmatprep.subr.mxu0 0.0
      %456 = vmatpush1.msra.mxu0 0.0
      %457 = vmatprep.subr.mxu0 0.0
      %458 = vmatpush1.msra.mxu0 0.0
      %459 = vmatprep.subr.mxu0 0.0
      %460 = vmatpush1.msra.mxu0 0.0
      %461 = vmatprep.subr.mxu0 0.0
      %462 = vmatpush1.msra.mxu0 0.0
      %463 = vmatprep.subr.mxu0 0.0
      %464 = vmatpush1.msra.mxu0 0.0
      %465 = vmatprep.subr.mxu0 0.0
      %466 = vmatpush1.msra.mxu0 0.0
      %467 = vmatprep.subr.mxu0 0.0
      %468 = vmatpush1.msra.mxu0 0.0
      %469 = vmatprep.subr.mxu0 0.0
      %470 = vmatpush1.msra.mxu0 0.0
      %471 = vmatprep.subr.mxu0 0.0
      %472 = vmatpush1.msra.mxu0 0.0
      %473 = vmatprep.subr.mxu0 0.0
      %474 = vmatpush1.msra.mxu0 0.0
      %475 = vmatprep.subr.mxu0 0.0
      %476 = vmatpush1.msra.mxu0 0.0
      %477 = vmatprep.subr.mxu0 0.0
      %478 = vmatpush1.msra.mxu0 0.0
      %479 = vmatprep.subr.mxu0 0.0
      %480 = vmatpush1.msra.mxu0 0.0
      %481 = vmatprep.subr.mxu0 0.0
      %482 = vmatpush1.msra.mxu0 0.0
      %483 = vmatprep.subr.mxu0 0.0
      %484 = vmatpush1.msra.mxu0 0.0
      %485 = vmatprep.subr.mxu0 0.0
      %486 = vmatpush1.msra.mxu0 0.0
      %487 = vmatprep.subr.mxu0 0.0
      %488 = vmatpush1.msra.mxu0 0.0
      %489 = vmatprep.subr.mxu0 0.0
      %490 = vmatpush1.msra.mxu0 0.0
      %491 = vmatprep.subr.mxu0 0.0
      %492 = vmatpush1.msra.mxu0 0.0
      %493 = vmatprep.subr.mxu0 0.0
      %494 = vmatpush1.msra.mxu0 0.0
      %495 = vmatprep.subr.mxu0 0.0
      %496 = vmatpush1.msra.mxu0 0.0
      %497 = vmatprep.subr.mxu0 0.0
      %498 = vmatpush1.msra.mxu0 0.0
      %499 = vmatprep.subr.mxu0 0.0
      %500 = vmatpush1.msra.mxu0 0.0
      %501 = vmatprep.subr.mxu0 0.0
      %502 = vmatpush1.msra.mxu0 0.0
      %503 = vmatprep.subr.mxu0 0.0
      %504 = vmatpush1.msra.mxu0 0.0
      %505 = vmatprep.subr.mxu0 0.0
      %506 = vmatpush1.msra.mxu0 0.0
      %507 = vmatprep.subr.mxu0 0.0
      %508 = vmatpush1.msra.mxu0 0.0
      %509 = vmatprep.subr.mxu0 0.0
      %510 = vmatpush1.msra.mxu0 0.0
      %511 = vmatprep.subr.mxu0 0.0
      %512 = vmatpush1.msra.mxu0 0.0
      %513 = vmatprep.mubr.f32.mxu0 0.0
      %514 = vmatmul.mubr.f32.gmra.mrb[0].mxu0 %v447
      %v515 = vpop.f32.mrb[0].mxu0
      %v516 = vadd.f32 0.0, %v515
      %v517 = vpop.f32.mrb[0].mxu0
      %518 = vdwg.mxu0
      %v519 = vadd.f32 %v441, %v516
      %v520 = vmul.f32 %v519, %v272
      %521 = vadd.xlane.f32.xlu0 %v520
      %v522 = vpop.xlane.xlu0 %521
      %vm523 = vcmask 7168
      %524 = vst.msk [vmem:[%s263] sm:$0xff] %vm523, %v522
      %v525 = vmul.f32 %v520, %v519
      %526 = vadd.xlane.f32.xlu0 %v525
      %v527 = vpop.xlane.xlu0 %526
      %528 = vst.msk [vmem:[%s267] sm:$0xff] %vm523, %v527
      %529 = vst [vmem:[%s259] sm:$0xff] %v519
      %p530 = scmp.lt.s32.totalorder %s18, 1
      %s531 = scalar_select %p530, %s18, 1
      %s532 = smul.addr %s531, 8
      %s533 = scalar_lea.vmem %s4, %s532
      %p534 = scmp.lt.s32.totalorder %s18, 1
      %s535 = scalar_select %p534, %s18, 1
      %s536 = smul.addr %s535, 8
      %s537 = scalar_lea.vmem %s5, %s536
      %p538 = scmp.lt.s32.totalorder %s18, 1
      %s539 = scalar_select %p538, %s18, 1
      %s540 = smul.addr %s539, 8
      %s541 = scalar_lea.vmem %s6, %s540
      // Predicated region
      $region37: #{residual_block.4} parent=35 // pred_check
        %p542 = pneg %p125
      $region38: #{residual_block.4} parent=35 // pred_check_branch
        %544 = sbr.rel (%p542) target = $region40
      $region39: #{residual_block.4} parent=35 // pred_region
        _
      $region40: #{residual_block.4} parent=35 // pred_fallthru
        _
      // Predicated region
      $region41: #{residual_block.4} parent=35 // pred_check
        %p545 = pneg %p151
      $region42: #{residual_block.4} parent=35 // pred_check_branch
        %547 = sbr.rel (%p545) target = $region44
      $region43: #{residual_block.4} parent=35 // pred_region
        _
      $region44: #{residual_block.4} parent=35 // pred_fallthru
        _
      // Predicated region
      $region45: #{residual_block.4} parent=35 // pred_check
        %p548 = pneg %p177
      $region46: #{residual_block.4} parent=35 // pred_check_branch
        %550 = sbr.rel (%p548) target = $region48
      $region47: #{residual_block.4} parent=35 // pred_region
        _
      $region48: #{residual_block.4} parent=35 // pred_fallthru
        _
    $region36: #{residual_block.4} parent=5 // pred_fallthru
      _
    %p551 = scmp.le.s32.totalorder 2, %s13
    // Predicated region
    $region49: #{residual_block.4} parent=5 // pred_check
      %p552 = pneg %p551
    $region50: #{residual_block.4} parent=5 // pred_check_branch
      %554 = sbr.rel (%p552) target = $region52
    $region51: #{residual_block.4} parent=5 // pred_region
      %s555 = ssub.s32 %s13, 2
      // Predicated region
      $region53: #{residual_block.4} parent=51 // pred_check
        %p556 = pneg %p131
      $region54: #{residual_block.4} parent=51 // pred_check_branch
        %558 = sbr.rel (%p556) target = $region56
      $region55: #{residual_block.4} parent=51 // pred_region
        %p559 = scmp.lt.s32.totalorder %s19, 1
        %s560 = scalar_select %p559, %s19, 1
        %s561 = smul.addr %s560, 8
        %s562 = scalar_lea.vmem %s4, %s561
      $region56: #{residual_block.4} parent=51 // pred_fallthru
        _
      // Predicated region
      $region57: #{residual_block.4} parent=51 // pred_check
        %p563 = pneg %p157
      $region58: #{residual_block.4} parent=51 // pred_check_branch
        %565 = sbr.rel (%p563) target = $region60
      $region59: #{residual_block.4} parent=51 // pred_region
        %p566 = scmp.lt.s32.totalorder %s19, 1
        %s567 = scalar_select %p566, %s19, 1
        %s568 = smul.addr %s567, 8
        %s569 = scalar_lea.vmem %s5, %s568
      $region60: #{residual_block.4} parent=51 // pred_fallthru
        _
      // Predicated region
      $region61: #{residual_block.4} parent=51 // pred_check
        %p570 = pneg %p183
      $region62: #{residual_block.4} parent=51 // pred_check_branch
        %572 = sbr.rel (%p570) target = $region64
      $region63: #{residual_block.4} parent=51 // pred_region
        %p573 = scmp.lt.s32.totalorder %s19, 1
        %s574 = scalar_select %p573, %s19, 1
        %s575 = smul.addr %s574, 8
        %s576 = scalar_lea.vmem %s6, %s575
      $region64: #{residual_block.4} parent=51 // pred_fallthru
        _
    $region52: #{residual_block.4} parent=5 // pred_fallthru
      _
  $region6: #{residual_block.4} parent=0 // loop_footer
    %s17 = sadd.s32 1, %s13
  $region7: #{residual_block.4} parent=0 // loop_footer_branch
    %12 = sbr.rel target = $region3
  $region8: #{residual_block.4} parent=0 // loop_exit
    _

</llo_original>
